<compile_context>
chip_gen: v6e
topology: v6e:2x2x1
jax: 0.10.0
libtpu: 0.0.40
codegen_flags: <defaults>
</compile_context>

<pallas_src>
import math

import jax
import jax.numpy as jnp
from jax.experimental import pallas as pl
from jax.experimental.pallas import tpu as pltpu


def _round_up(x, m):
    return (x + m - 1) // m * m


def _gru_pred_kernel(
    x_ref,       # (T*B_pad, F)        time-major, batch-padded input
    wih_ref,     # (F, 2*G_pad)        [W_ih_f^T | W_ih_b^T], gate blocks lane-padded
    bih_ref,     # (1, 2*G_pad)        b_ih + b_hh(r,z folded), per direction
    whh_ref,     # (H, 2*G_pad)        [W_hh_f^T | W_hh_b^T]
    bhhn_ref,    # (2*B_pad, H)        n-gate recurrent bias, fwd rows / bwd rows
    wfcf_ref,    # (H, C_pad)          FC weight^T rows for forward hidden
    wfcb_ref,    # (H, C_pad)          FC weight^T rows for backward hidden
    bfc_ref,     # (1, C_pad)
    o_ref,       # (T*B_pad, C_pad)    lane-dense 2D output slab
    gx_ref,      # scratch VMEM (T*B_pad, 2*G_pad)  hoisted input-gate pre-acts
    h_ref,       # scratch VMEM (2*B_pad, H)        stacked hidden (fwd | bwd rows)
    yf_ref,      # scratch VMEM (T*B_pad, H)        per-time forward hidden
    yb_ref,      # scratch VMEM (T*B_pad, H)        per-time backward hidden
):
    TB, Gp2 = gx_ref.shape
    Bp2, H = h_ref.shape
    B_pad = Bp2 // 2
    G_pad = Gp2 // 2
    T = TB // B_pad
    H2 = 2 * H
    H3 = 3 * H

    # ---- Phase 1: hoisted input projection for both directions (one matmul).
    # r/z recurrent biases are already folded into bih (wrapper).
    gx_ref[...] = (
        jnp.dot(x_ref[...], wih_ref[...], preferred_element_type=jnp.float32)
        + bih_ref[...]
    )

    h_ref[...] = jnp.zeros_like(h_ref)

    # ---- loop invariants (hoisted: JAX does not CSE these inside the loop)
    whh = whh_ref[...]       # (H, 2*G_pad)
    bhhn = bhhn_ref[...]     # (2*B_pad, H)

    def step(t, carry):
        tb = T - 1 - t
        rf = pl.multiple_of(t * B_pad, B_pad)    # fwd reads input time t
        rb = pl.multiple_of(tb * B_pad, B_pad)   # bwd reads input time T-1-t

        h_prev = h_ref[...]                                       # (2*B_pad, H)
        # Fused recurrent matmul, both directions in one MXU push.
        gh_all = jnp.dot(h_prev, whh,
                         preferred_element_type=jnp.float32)      # (2*B_pad, 2*G_pad)
        # Stack fwd/bwd gate slabs along sublanes; every slice is tile-aligned.
        gh = jnp.concatenate(
            [gh_all[:B_pad, :G_pad], gh_all[B_pad:, G_pad:]], axis=0)  # (2*B_pad, G_pad)
        gx = jnp.concatenate(
            [gx_ref[pl.ds(rf, B_pad), pl.ds(0, G_pad)],
             gx_ref[pl.ds(rb, B_pad), pl.ds(G_pad, G_pad)]], axis=0)   # (2*B_pad, G_pad)

        # PyTorch GRU cell, both directions at once:
        #   r = sigmoid(gx_r + gh_r); z = sigmoid(gx_z + gh_z)
        #   n = tanh(gx_n + r * (gh_n + b_hh_n)); h' = (1-z)*n + z*h
        # r and z share one EUP push: sigmoid(x) = 0.5*(tanh(x/2)+1).
        rz = 0.5 * (jnp.tanh(0.5 * (gx[:, :H2] + gh[:, :H2])) + 1.0)
        r = rz[:, :H]
        z = rz[:, H:]
        n = jnp.tanh(gx[:, H2:H3] + r * (gh[:, H2:H3] + bhhn))
        h_new = n + z * (h_prev - n)

        h_ref[...] = h_new
        # Per-step hidden writeback (off the h->h chain); FC head runs after
        # the loop.  Forward hidden belongs to output time t, backward to T-1-t.
        yf_ref[pl.ds(rf, B_pad), :] = h_new[:B_pad, :]
        yb_ref[pl.ds(rb, B_pad), :] = h_new[B_pad:, :]
        return carry

    # Short static trip count -> fully unroll for LLO scheduler visibility.
    # (For long sequences switch to a partial unroll, e.g. unroll=4.)
    jax.lax.fori_loop(0, T, step, 0, unroll=True)

    # ---- Dropout = identity (eval mode).  FC head: one pass, lane-dense output.
    o_ref[...] = (
        jnp.dot(yf_ref[...], wfcf_ref[...], preferred_element_type=jnp.float32)
        + jnp.dot(yb_ref[...], wfcb_ref[...], preferred_element_type=jnp.float32)
        + bfc_ref[...]
    )


def gru_prediction_pallas(x, params):
    """x: (B, T, F) float32 -> logits (B, T, num_classes) float32."""
    B, T, F = x.shape
    H = params["whh_f"].shape[1]
    C = params["wfc"].shape[0]

    B_pad = _round_up(max(B, 8), 8)       # sublane-aligned batch
    G = 3 * H
    G_pad = _round_up(G, 128)             # lane-aligned per-direction gate block
    C_pad = _round_up(C, 128)             # lane-dense output slab

    # Glue (tiny, one-time XLA ops): time-major + batch padding so the hoisted
    # input projection is one dense matmul and every per-step slice is aligned.
    x_tm = jnp.zeros((T, B_pad, F), jnp.float32).at[:, :B, :].set(
        jnp.transpose(x, (1, 0, 2)).astype(jnp.float32))
    x2d = x_tm.reshape(T * B_pad, F)

    def pad_dir(wih, whh, bih, bhh):
        wih_t = jnp.zeros((F, G_pad), jnp.float32).at[:, :G].set(wih.T)
        whh_t = jnp.zeros((H, G_pad), jnp.float32).at[:, :G].set(whh.T)
        # Fold the r/z recurrent biases into the hoisted projection bias;
        # the n-gate recurrent bias must stay inside r*(...) in the loop.
        bhh_rz = jnp.concatenate([bhh[: 2 * H], jnp.zeros((H,), jnp.float32)])
        bih_fold = jnp.zeros((G_pad,), jnp.float32).at[:G].set(bih + bhh_rz)
        bhh_n = bhh[2 * H:]                                   # (H,)
        return wih_t, whh_t, bih_fold, bhh_n

    wih_f, whh_f, bih_f, bhhn_f = pad_dir(params["wih_f"], params["whh_f"],
                                          params["bih_f"], params["bhh_f"])
    wih_b, whh_b, bih_b, bhhn_b = pad_dir(params["wih_b"], params["whh_b"],
                                          params["bih_b"], params["bhh_b"])

    wih_cat = jnp.concatenate([wih_f, wih_b], axis=1)         # (F, 2*G_pad)
    whh_cat = jnp.concatenate([whh_f, whh_b], axis=1)         # (H, 2*G_pad)
    bih_cat = jnp.concatenate([bih_f, bih_b]).reshape(1, 2 * G_pad)
    bhhn_stack = jnp.concatenate(
        [jnp.broadcast_to(bhhn_f, (B_pad, H)),
         jnp.broadcast_to(bhhn_b, (B_pad, H))], axis=0)       # (2*B_pad, H)

    wfc_t = params["wfc"].T.astype(jnp.float32)               # (2H, C)
    wfcf = jnp.zeros((H, C_pad), jnp.float32).at[:, :C].set(wfc_t[:H])
    wfcb = jnp.zeros((H, C_pad), jnp.float32).at[:, :C].set(wfc_t[H:])
    bfc = jnp.zeros((1, C_pad), jnp.float32).at[0, :C].set(params["bfc"])

    def full_spec(shape):
        n = len(shape)
        return pl.BlockSpec(shape, lambda i, _n=n: (0,) * _n)

    grid_spec = pltpu.PrefetchScalarGridSpec(
        num_scalar_prefetch=0,
        grid=(1,),   # single invocation; recurrence is an in-kernel loop
        in_specs=[
            full_spec(x2d.shape),
            full_spec(wih_cat.shape),
            full_spec(bih_cat.shape),
            full_spec(whh_cat.shape),
            full_spec(bhhn_stack.shape),
            full_spec(wfcf.shape),
            full_spec(wfcb.shape),
            full_spec(bfc.shape),
        ],
        out_specs=full_spec((T * B_pad, C_pad)),
        scratch_shapes=[
            pltpu.VMEM((T * B_pad, 2 * G_pad), jnp.float32),   # gx (both dirs)
            pltpu.VMEM((2 * B_pad, H), jnp.float32),           # stacked hidden
            pltpu.VMEM((T * B_pad, H), jnp.float32),           # fwd hidden per t
            pltpu.VMEM((T * B_pad, H), jnp.float32),           # bwd hidden per t
        ],
    )

    out2d = pl.pallas_call(
        _gru_pred_kernel,
        out_shape=jax.ShapeDtypeStruct((T * B_pad, C_pad), jnp.float32),
        grid_spec=grid_spec,
        compiler_params=pltpu.CompilerParams(
            dimension_semantics=("arbitrary",),
            # Resident footprint here is << 1 MiB; explicit safe budget that
            # fits v5e/v6e (128 MiB) and v7x (64 MiB physical) VMEM.
            vmem_limit_bytes=32 * 1024 * 1024,
        ),
    )(x2d, wih_cat, bih_cat, whh_cat, bhhn_stack, wfcf, wfcb, bfc)

    # (T*B_pad, C_pad) slab -> (B, T, C)
    out = out2d.reshape(T, B_pad, C_pad)[:, :B, :C]
    return jnp.transpose(out, (1, 0, 2))


# ------------------------- pure-JAX reference ------------------------------
def _gru_dir_ref(x, wih, whh, bih, bhh):
    # x: (B, T, F) -> (B, T, H); PyTorch GRU cell equations.
    B, T, F = x.shape
    H = whh.shape[1]

    def step(h, xt):
        gx = xt @ wih.T + bih
        gh = h @ whh.T + bhh
        r = jax.nn.sigmoid(gx[:, :H] + gh[:, :H])
        z = jax.nn.sigmoid(gx[:, H:2 * H] + gh[:, H:2 * H])
        n = jnp.tanh(gx[:, 2 * H:] + r * gh[:, 2 * H:])
        h_new = (1.0 - z) * n + z * h
        return h_new, h_new

    h0 = jnp.zeros((B, H), jnp.float32)
    _, ys = jax.lax.scan(step, h0, jnp.transpose(x, (1, 0, 2)))
    return jnp.transpose(ys, (1, 0, 2))


def gru_prediction_ref(x, params):
    y_f = _gru_dir_ref(x, params["wih_f"], params["whh_f"],
                       params["bih_f"], params["bhh_f"])
    x_rev = x[:, ::-1, :]
    y_b = _gru_dir_ref(x_rev, params["wih_b"], params["whh_b"],
                       params["bih_b"], params["bhh_b"])[:, ::-1, :]
    y = jnp.concatenate([y_f, y_b], axis=-1)              # (B, T, 2H)
    return y @ params["wfc"].T + params["bfc"]             # (B, T, C)


# ------------------------------ setup / run --------------------------------
def init_params(key, feat_dim, hidden_dim, num_classes):
    ks = jax.random.split(key, 10)
    s_gru = 1.0 / math.sqrt(hidden_dim)
    s_fc = 1.0 / math.sqrt(2 * hidden_dim)
    u = lambda k, shape, s: jax.random.uniform(k, shape, jnp.float32, -s, s)
    return {
        "wih_f": u(ks[0], (3 * hidden_dim, feat_dim), s_gru),
        "whh_f": u(ks[1], (3 * hidden_dim, hidden_dim), s_gru),
        "bih_f": u(ks[2], (3 * hidden_dim,), s_gru),
        "bhh_f": u(ks[3], (3 * hidden_dim,), s_gru),
        "wih_b": u(ks[4], (3 * hidden_dim, feat_dim), s_gru),
        "whh_b": u(ks[5], (3 * hidden_dim, hidden_dim), s_gru),
        "bih_b": u(ks[6], (3 * hidden_dim,), s_gru),
        "bhh_b": u(ks[7], (3 * hidden_dim,), s_gru),
        "wfc": u(ks[8], (num_classes, 2 * hidden_dim), s_fc),
        "bfc": u(ks[9], (num_classes,), s_fc),
    }


if __name__ == "__main__":
    B, T, FEAT, HID, NCLS = 2, 8, 16, 32, 4

    key = jax.random.PRNGKey(0)
    k_x, k_p = jax.random.split(key)
    x = jax.random.normal(k_x, (B, T, FEAT), jnp.float32)
    params = init_params(k_p, FEAT, HID, NCLS)

    ref = jax.block_until_ready(gru_prediction_ref(x, params))

    out = jax.block_until_ready(gru_prediction_pallas(x, params))
    assert out.shape == (B, T, NCLS), out.shape
    assert jnp.allclose(out, ref, rtol=1e-4, atol=1e-4), (
        float(jnp.max(jnp.abs(out - ref))))

    print("KERNEL_OK")
</pallas_src>

<mosaic_0001>
module attributes {stable_mosaic.version = 11 : i64} {
  func.func @_gru_pred_kernel(%arg0: i32, %arg1: memref<64x16xf32, #tpu.memory_space<vmem>>, %arg2: memref<16x256xf32, #tpu.memory_space<vmem>>, %arg3: memref<1x256xf32, #tpu.memory_space<vmem>>, %arg4: memref<32x256xf32, #tpu.memory_space<vmem>>, %arg5: memref<16x32xf32, #tpu.memory_space<vmem>>, %arg6: memref<32x128xf32, #tpu.memory_space<vmem>>, %arg7: memref<32x128xf32, #tpu.memory_space<vmem>>, %arg8: memref<1x128xf32, #tpu.memory_space<vmem>>, %arg9: memref<64x128xf32, #tpu.memory_space<vmem>>, %arg10: memref<64x256xf32, #tpu.memory_space<vmem>>, %arg11: memref<16x32xf32, #tpu.memory_space<vmem>>, %arg12: memref<64x32xf32, #tpu.memory_space<vmem>>, %arg13: memref<64x32xf32, #tpu.memory_space<vmem>>) attributes {dimension_semantics = [#tpu.dimension_semantics<arbitrary>], iteration_bounds = array<i64: 1>, scalar_prefetch = 0 : i64, scratch_operands = 4 : i64, tpu.core_type = #tpu.core_type<tc>, window_params = [{pipeline_mode = #tpu.pipeline_mode<synchronous>, transform_indices = @transform_0, window_bounds = array<i64: 64, 16>}, {pipeline_mode = #tpu.pipeline_mode<synchronous>, transform_indices = @transform_1, window_bounds = array<i64: 16, 256>}, {pipeline_mode = #tpu.pipeline_mode<synchronous>, transform_indices = @transform_2, window_bounds = array<i64: 1, 256>}, {pipeline_mode = #tpu.pipeline_mode<synchronous>, transform_indices = @transform_3, window_bounds = array<i64: 32, 256>}, {pipeline_mode = #tpu.pipeline_mode<synchronous>, transform_indices = @transform_4, window_bounds = array<i64: 16, 32>}, {pipeline_mode = #tpu.pipeline_mode<synchronous>, transform_indices = @transform_5, window_bounds = array<i64: 32, 128>}, {pipeline_mode = #tpu.pipeline_mode<synchronous>, transform_indices = @transform_6, window_bounds = array<i64: 32, 128>}, {pipeline_mode = #tpu.pipeline_mode<synchronous>, transform_indices = @transform_7, window_bounds = array<i64: 1, 128>}, {pipeline_mode = #tpu.pipeline_mode<synchronous>, transform_indices = @transform_8, window_bounds = array<i64: 64, 128>}]} {
    %c0 = arith.constant 0 : index
    %c0_0 = arith.constant 0 : index
    %0 = vector.load %arg1[%c0, %c0_0] : memref<64x16xf32, #tpu.memory_space<vmem>>, vector<64x16xf32>
    %c0_1 = arith.constant 0 : index
    %c0_2 = arith.constant 0 : index
    %1 = vector.load %arg2[%c0_1, %c0_2] : memref<16x256xf32, #tpu.memory_space<vmem>>, vector<16x256xf32>
    %cst = arith.constant dense<0.000000e+00> : vector<64x256xf32>
    %2 = tpu.matmul %0, %1, %cst {dimension_numbers = #tpu.dot_dimension_numbers<[1], [0], [0], [1], [0, 0, 1, 1], [], []>} : vector<64x16xf32>, vector<16x256xf32>, vector<64x256xf32> -> vector<64x256xf32>
    %c0_3 = arith.constant 0 : index
    %c0_4 = arith.constant 0 : index
    %3 = vector.load %arg3[%c0_3, %c0_4] : memref<1x256xf32, #tpu.memory_space<vmem>>, vector<1x256xf32>
    %4 = vector.broadcast %3 : vector<1x256xf32> to vector<64x256xf32>
    %5 = arith.addf %2, %4 : vector<64x256xf32>
    %c0_5 = arith.constant 0 : index
    %c0_6 = arith.constant 0 : index
    %6 = vector.load %arg10[%c0_5, %c0_6] : memref<64x256xf32, #tpu.memory_space<vmem>>, vector<64x256xf32>
    tpu.vector_store %arg10[%c0_5, %c0_6], %5 {strides = array<i32>} : memref<64x256xf32, #tpu.memory_space<vmem>>, vector<64x256xf32>,
    %cst_7 = arith.constant 0.000000e+00 : f32
    %7 = vector.broadcast %cst_7 : f32 to vector<16x32xf32>
    %c0_8 = arith.constant 0 : index
    %c0_9 = arith.constant 0 : index
    %8 = vector.load %arg11[%c0_8, %c0_9] : memref<16x32xf32, #tpu.memory_space<vmem>>, vector<16x32xf32>
    tpu.vector_store %arg11[%c0_8, %c0_9], %7 {strides = array<i32>} : memref<16x32xf32, #tpu.memory_space<vmem>>, vector<16x32xf32>,
    %c0_10 = arith.constant 0 : index
    %c0_11 = arith.constant 0 : index
    %9 = vector.load %arg4[%c0_10, %c0_11] : memref<32x256xf32, #tpu.memory_space<vmem>>, vector<32x256xf32>
    %c0_12 = arith.constant 0 : index
    %c0_13 = arith.constant 0 : index
    %10 = vector.load %arg5[%c0_12, %c0_13] : memref<16x32xf32, #tpu.memory_space<vmem>>, vector<16x32xf32>
    %c0_i32 = arith.constant 0 : i32
    %c7_i32 = arith.constant 7 : i32
    %11 = arith.subi %c7_i32, %c0_i32 : i32
    %c8_i32 = arith.constant 8 : i32
    %12 = arith.muli %c0_i32, %c8_i32 : i32
    %13 = tpu.assume_multiple %12, 8 : i32
    %c8_i32_14 = arith.constant 8 : i32
    %14 = arith.muli %11, %c8_i32_14 : i32
    %15 = tpu.assume_multiple %14, 8 : i32
    %c0_15 = arith.constant 0 : index
    %c0_16 = arith.constant 0 : index
    %16 = vector.load %arg11[%c0_15, %c0_16] : memref<16x32xf32, #tpu.memory_space<vmem>>, vector<16x32xf32>
    %cst_17 = arith.constant dense<0.000000e+00> : vector<16x256xf32>
    %17 = tpu.matmul %16, %9, %cst_17 {dimension_numbers = #tpu.dot_dimension_numbers<[1], [0], [0], [1], [0, 0, 1, 1], [], []>} : vector<16x32xf32>, vector<32x256xf32>, vector<16x256xf32> -> vector<16x256xf32>
    %18 = vector.extract_strided_slice %17 {offsets = [0, 0], sizes = [8, 128], strides = [1, 1]} : vector<16x256xf32> to vector<8x128xf32>
    %19 = vector.extract_strided_slice %17 {offsets = [8, 128], sizes = [8, 128], strides = [1, 1]} : vector<16x256xf32> to vector<8x128xf32>
    %20 = tpu.concatenate %18, %19 in 0 : vector<8x128xf32>, vector<8x128xf32> -> vector<16x128xf32>
    %21 = arith.index_cast %13 : i32 to index
    %c0_18 = arith.constant 0 : index
    %22 = vector.load %arg10[%21, %c0_18] : memref<64x256xf32, #tpu.memory_space<vmem>>, vector<8x128xf32>
    %23 = arith.index_cast %15 : i32 to index
    %c128 = arith.constant 128 : index
    %24 = vector.load %arg10[%23, %c128] : memref<64x256xf32, #tpu.memory_space<vmem>>, vector<8x128xf32>
    %25 = tpu.concatenate %22, %24 in 0 : vector<8x128xf32>, vector<8x128xf32> -> vector<16x128xf32>
    %26 = vector.extract_strided_slice %25 {offsets = [0, 0], sizes = [16, 64], strides = [1, 1]} : vector<16x128xf32> to vector<16x64xf32>
    %27 = vector.extract_strided_slice %20 {offsets = [0, 0], sizes = [16, 64], strides = [1, 1]} : vector<16x128xf32> to vector<16x64xf32>
    %28 = arith.addf %26, %27 : vector<16x64xf32>
    %cst_19 = arith.constant 5.000000e-01 : f32
    %29 = vector.broadcast %cst_19 : f32 to vector<16x64xf32>
    %30 = arith.mulf %29, %28 : vector<16x64xf32>
    %31 = math.tanh %30 : vector<16x64xf32>
    %cst_20 = arith.constant 1.000000e+00 : f32
    %32 = vector.broadcast %cst_20 : f32 to vector<16x64xf32>
    %33 = arith.addf %31, %32 : vector<16x64xf32>
    %cst_21 = arith.constant 5.000000e-01 : f32
    %34 = vector.broadcast %cst_21 : f32 to vector<16x64xf32>
    %35 = arith.mulf %34, %33 : vector<16x64xf32>
    %36 = vector.extract_strided_slice %35 {offsets = [0, 0], sizes = [16, 32], strides = [1, 1]} : vector<16x64xf32> to vector<16x32xf32>
    %37 = vector.extract_strided_slice %35 {offsets = [0, 32], sizes = [16, 32], strides = [1, 1]} : vector<16x64xf32> to vector<16x32xf32>
    %38 = vector.extract_strided_slice %25 {offsets = [0, 64], sizes = [16, 32], strides = [1, 1]} : vector<16x128xf32> to vector<16x32xf32>
    %39 = vector.extract_strided_slice %20 {offsets = [0, 64], sizes = [16, 32], strides = [1, 1]} : vector<16x128xf32> to vector<16x32xf32>
    %40 = arith.addf %39, %10 : vector<16x32xf32>
    %41 = arith.mulf %36, %40 : vector<16x32xf32>
    %42 = arith.addf %38, %41 : vector<16x32xf32>
    %43 = math.tanh %42 : vector<16x32xf32>
    %44 = arith.subf %16, %43 : vector<16x32xf32>
    %45 = arith.mulf %37, %44 : vector<16x32xf32>
    %46 = arith.addf %43, %45 : vector<16x32xf32>
    %c0_22 = arith.constant 0 : index
    %c0_23 = arith.constant 0 : index
    %47 = vector.load %arg11[%c0_22, %c0_23] : memref<16x32xf32, #tpu.memory_space<vmem>>, vector<16x32xf32>
    tpu.vector_store %arg11[%c0_22, %c0_23], %46 {strides = array<i32>} : memref<16x32xf32, #tpu.memory_space<vmem>>, vector<16x32xf32>,
    %48 = vector.extract_strided_slice %46 {offsets = [0, 0], sizes = [8, 32], strides = [1, 1]} : vector<16x32xf32> to vector<8x32xf32>
    %49 = arith.index_cast %13 : i32 to index
    %c0_24 = arith.constant 0 : index
    %50 = vector.load %arg12[%49, %c0_24] : memref<64x32xf32, #tpu.memory_space<vmem>>, vector<8x32xf32>
    tpu.vector_store %arg12[%49, %c0_24], %48 {strides = array<i32>} : memref<64x32xf32, #tpu.memory_space<vmem>>, vector<8x32xf32>,
    %51 = vector.extract_strided_slice %46 {offsets = [8, 0], sizes = [8, 32], strides = [1, 1]} : vector<16x32xf32> to vector<8x32xf32>
    %52 = arith.index_cast %15 : i32 to index
    %c0_25 = arith.constant 0 : index
    %53 = vector.load %arg13[%52, %c0_25] : memref<64x32xf32, #tpu.memory_space<vmem>>, vector<8x32xf32>
    tpu.vector_store %arg13[%52, %c0_25], %51 {strides = array<i32>} : memref<64x32xf32, #tpu.memory_space<vmem>>, vector<8x32xf32>,
    %c1_i32 = arith.constant 1 : i32
    %c7_i32_26 = arith.constant 7 : i32
    %54 = arith.subi %c7_i32_26, %c1_i32 : i32
    %c8_i32_27 = arith.constant 8 : i32
    %55 = arith.muli %c1_i32, %c8_i32_27 : i32
    %56 = tpu.assume_multiple %55, 8 : i32
    %c8_i32_28 = arith.constant 8 : i32
    %57 = arith.muli %54, %c8_i32_28 : i32
    %58 = tpu.assume_multiple %57, 8 : i32
    %c0_29 = arith.constant 0 : index
    %c0_30 = arith.constant 0 : index
    %59 = vector.load %arg11[%c0_29, %c0_30] : memref<16x32xf32, #tpu.memory_space<vmem>>, vector<16x32xf32>
    %cst_31 = arith.constant dense<0.000000e+00> : vector<16x256xf32>
    %60 = tpu.matmul %59, %9, %cst_31 {dimension_numbers = #tpu.dot_dimension_numbers<[1], [0], [0], [1], [0, 0, 1, 1], [], []>} : vector<16x32xf32>, vector<32x256xf32>, vector<16x256xf32> -> vector<16x256xf32>
    %61 = vector.extract_strided_slice %60 {offsets = [0, 0], sizes = [8, 128], strides = [1, 1]} : vector<16x256xf32> to vector<8x128xf32>
    %62 = vector.extract_strided_slice %60 {offsets = [8, 128], sizes = [8, 128], strides = [1, 1]} : vector<16x256xf32> to vector<8x128xf32>
    %63 = tpu.concatenate %61, %62 in 0 : vector<8x128xf32>, vector<8x128xf32> -> vector<16x128xf32>
    %64 = arith.index_cast %56 : i32 to index
    %c0_32 = arith.constant 0 : index
    %65 = vector.load %arg10[%64, %c0_32] : memref<64x256xf32, #tpu.memory_space<vmem>>, vector<8x128xf32>
    %66 = arith.index_cast %58 : i32 to index
    %c128_33 = arith.constant 128 : index
    %67 = vector.load %arg10[%66, %c128_33] : memref<64x256xf32, #tpu.memory_space<vmem>>, vector<8x128xf32>
    %68 = tpu.concatenate %65, %67 in 0 : vector<8x128xf32>, vector<8x128xf32> -> vector<16x128xf32>
    %69 = vector.extract_strided_slice %68 {offsets = [0, 0], sizes = [16, 64], strides = [1, 1]} : vector<16x128xf32> to vector<16x64xf32>
    %70 = vector.extract_strided_slice %63 {offsets = [0, 0], sizes = [16, 64], strides = [1, 1]} : vector<16x128xf32> to vector<16x64xf32>
    %71 = arith.addf %69, %70 : vector<16x64xf32>
    %cst_34 = arith.constant 5.000000e-01 : f32
    %72 = vector.broadcast %cst_34 : f32 to vector<16x64xf32>
    %73 = arith.mulf %72, %71 : vector<16x64xf32>
    %74 = math.tanh %73 : vector<16x64xf32>
    %cst_35 = arith.constant 1.000000e+00 : f32
    %75 = vector.broadcast %cst_35 : f32 to vector<16x64xf32>
    %76 = arith.addf %74, %75 : vector<16x64xf32>
    %cst_36 = arith.constant 5.000000e-01 : f32
    %77 = vector.broadcast %cst_36 : f32 to vector<16x64xf32>
    %78 = arith.mulf %77, %76 : vector<16x64xf32>
    %79 = vector.extract_strided_slice %78 {offsets = [0, 0], sizes = [16, 32], strides = [1, 1]} : vector<16x64xf32> to vector<16x32xf32>
    %80 = vector.extract_strided_slice %78 {offsets = [0, 32], sizes = [16, 32], strides = [1, 1]} : vector<16x64xf32> to vector<16x32xf32>
    %81 = vector.extract_strided_slice %68 {offsets = [0, 64], sizes = [16, 32], strides = [1, 1]} : vector<16x128xf32> to vector<16x32xf32>
    %82 = vector.extract_strided_slice %63 {offsets = [0, 64], sizes = [16, 32], strides = [1, 1]} : vector<16x128xf32> to vector<16x32xf32>
    %83 = arith.addf %82, %10 : vector<16x32xf32>
    %84 = arith.mulf %79, %83 : vector<16x32xf32>
    %85 = arith.addf %81, %84 : vector<16x32xf32>
    %86 = math.tanh %85 : vector<16x32xf32>
    %87 = arith.subf %59, %86 : vector<16x32xf32>
    %88 = arith.mulf %80, %87 : vector<16x32xf32>
    %89 = arith.addf %86, %88 : vector<16x32xf32>
    %c0_37 = arith.constant 0 : index
    %c0_38 = arith.constant 0 : index
    %90 = vector.load %arg11[%c0_37, %c0_38] : memref<16x32xf32, #tpu.memory_space<vmem>>, vector<16x32xf32>
    tpu.vector_store %arg11[%c0_37, %c0_38], %89 {strides = array<i32>} : memref<16x32xf32, #tpu.memory_space<vmem>>, vector<16x32xf32>,
    %91 = vector.extract_strided_slice %89 {offsets = [0, 0], sizes = [8, 32], strides = [1, 1]} : vector<16x32xf32> to vector<8x32xf32>
    %92 = arith.index_cast %56 : i32 to index
    %c0_39 = arith.constant 0 : index
    %93 = vector.load %arg12[%92, %c0_39] : memref<64x32xf32, #tpu.memory_space<vmem>>, vector<8x32xf32>
    tpu.vector_store %arg12[%92, %c0_39], %91 {strides = array<i32>} : memref<64x32xf32, #tpu.memory_space<vmem>>, vector<8x32xf32>,
    %94 = vector.extract_strided_slice %89 {offsets = [8, 0], sizes = [8, 32], strides = [1, 1]} : vector<16x32xf32> to vector<8x32xf32>
    %95 = arith.index_cast %58 : i32 to index
    %c0_40 = arith.constant 0 : index
    %96 = vector.load %arg13[%95, %c0_40] : memref<64x32xf32, #tpu.memory_space<vmem>>, vector<8x32xf32>
    tpu.vector_store %arg13[%95, %c0_40], %94 {strides = array<i32>} : memref<64x32xf32, #tpu.memory_space<vmem>>, vector<8x32xf32>,
    %c2_i32 = arith.constant 2 : i32
    %c7_i32_41 = arith.constant 7 : i32
    %97 = arith.subi %c7_i32_41, %c2_i32 : i32
    %c8_i32_42 = arith.constant 8 : i32
    %98 = arith.muli %c2_i32, %c8_i32_42 : i32
    %99 = tpu.assume_multiple %98, 8 : i32
    %c8_i32_43 = arith.constant 8 : i32
    %100 = arith.muli %97, %c8_i32_43 : i32
    %101 = tpu.assume_multiple %100, 8 : i32
    %c0_44 = arith.constant 0 : index
    %c0_45 = arith.constant 0 : index
    %102 = vector.load %arg11[%c0_44, %c0_45] : memref<16x32xf32, #tpu.memory_space<vmem>>, vector<16x32xf32>
    %cst_46 = arith.constant dense<0.000000e+00> : vector<16x256xf32>
    %103 = tpu.matmul %102, %9, %cst_46 {dimension_numbers = #tpu.dot_dimension_numbers<[1], [0], [0], [1], [0, 0, 1, 1], [], []>} : vector<16x32xf32>, vector<32x256xf32>, vector<16x256xf32> -> vector<16x256xf32>
    %104 = vector.extract_strided_slice %103 {offsets = [0, 0], sizes = [8, 128], strides = [1, 1]} : vector<16x256xf32> to vector<8x128xf32>
    %105 = vector.extract_strided_slice %103 {offsets = [8, 128], sizes = [8, 128], strides = [1, 1]} : vector<16x256xf32> to vector<8x128xf32>
    %106 = tpu.concatenate %104, %105 in 0 : vector<8x128xf32>, vector<8x128xf32> -> vector<16x128xf32>
    %107 = arith.index_cast %99 : i32 to index
    %c0_47 = arith.constant 0 : index
    %108 = vector.load %arg10[%107, %c0_47] : memref<64x256xf32, #tpu.memory_space<vmem>>, vector<8x128xf32>
    %109 = arith.index_cast %101 : i32 to index
    %c128_48 = arith.constant 128 : index
    %110 = vector.load %arg10[%109, %c128_48] : memref<64x256xf32, #tpu.memory_space<vmem>>, vector<8x128xf32>
    %111 = tpu.concatenate %108, %110 in 0 : vector<8x128xf32>, vector<8x128xf32> -> vector<16x128xf32>
    %112 = vector.extract_strided_slice %111 {offsets = [0, 0], sizes = [16, 64], strides = [1, 1]} : vector<16x128xf32> to vector<16x64xf32>
    %113 = vector.extract_strided_slice %106 {offsets = [0, 0], sizes = [16, 64], strides = [1, 1]} : vector<16x128xf32> to vector<16x64xf32>
    %114 = arith.addf %112, %113 : vector<16x64xf32>
    %cst_49 = arith.constant 5.000000e-01 : f32
    %115 = vector.broadcast %cst_49 : f32 to vector<16x64xf32>
    %116 = arith.mulf %115, %114 : vector<16x64xf32>
    %117 = math.tanh %116 : vector<16x64xf32>
    %cst_50 = arith.constant 1.000000e+00 : f32
    %118 = vector.broadcast %cst_50 : f32 to vector<16x64xf32>
    %119 = arith.addf %117, %118 : vector<16x64xf32>
    %cst_51 = arith.constant 5.000000e-01 : f32
    %120 = vector.broadcast %cst_51 : f32 to vector<16x64xf32>
    %121 = arith.mulf %120, %119 : vector<16x64xf32>
    %122 = vector.extract_strided_slice %121 {offsets = [0, 0], sizes = [16, 32], strides = [1, 1]} : vector<16x64xf32> to vector<16x32xf32>
    %123 = vector.extract_strided_slice %121 {offsets = [0, 32], sizes = [16, 32], strides = [1, 1]} : vector<16x64xf32> to vector<16x32xf32>
    %124 = vector.extract_strided_slice %111 {offsets = [0, 64], sizes = [16, 32], strides = [1, 1]} : vector<16x128xf32> to vector<16x32xf32>
    %125 = vector.extract_strided_slice %106 {offsets = [0, 64], sizes = [16, 32], strides = [1, 1]} : vector<16x128xf32> to vector<16x32xf32>
    %126 = arith.addf %125, %10 : vector<16x32xf32>
    %127 = arith.mulf %122, %126 : vector<16x32xf32>
    %128 = arith.addf %124, %127 : vector<16x32xf32>
    %129 = math.tanh %128 : vector<16x32xf32>
    %130 = arith.subf %102, %129 : vector<16x32xf32>
    %131 = arith.mulf %123, %130 : vector<16x32xf32>
    %132 = arith.addf %129, %131 : vector<16x32xf32>
    %c0_52 = arith.constant 0 : index
    %c0_53 = arith.constant 0 : index
    %133 = vector.load %arg11[%c0_52, %c0_53] : memref<16x32xf32, #tpu.memory_space<vmem>>, vector<16x32xf32>
    tpu.vector_store %arg11[%c0_52, %c0_53], %132 {strides = array<i32>} : memref<16x32xf32, #tpu.memory_space<vmem>>, vector<16x32xf32>,
    %134 = vector.extract_strided_slice %132 {offsets = [0, 0], sizes = [8, 32], strides = [1, 1]} : vector<16x32xf32> to vector<8x32xf32>
    %135 = arith.index_cast %99 : i32 to index
    %c0_54 = arith.constant 0 : index
    %136 = vector.load %arg12[%135, %c0_54] : memref<64x32xf32, #tpu.memory_space<vmem>>, vector<8x32xf32>
    tpu.vector_store %arg12[%135, %c0_54], %134 {strides = array<i32>} : memref<64x32xf32, #tpu.memory_space<vmem>>, vector<8x32xf32>,
    %137 = vector.extract_strided_slice %132 {offsets = [8, 0], sizes = [8, 32], strides = [1, 1]} : vector<16x32xf32> to vector<8x32xf32>
    %138 = arith.index_cast %101 : i32 to index
    %c0_55 = arith.constant 0 : index
    %139 = vector.load %arg13[%138, %c0_55] : memref<64x32xf32, #tpu.memory_space<vmem>>, vector<8x32xf32>
    tpu.vector_store %arg13[%138, %c0_55], %137 {strides = array<i32>} : memref<64x32xf32, #tpu.memory_space<vmem>>, vector<8x32xf32>,
    %c3_i32 = arith.constant 3 : i32
    %c7_i32_56 = arith.constant 7 : i32
    %140 = arith.subi %c7_i32_56, %c3_i32 : i32
    %c8_i32_57 = arith.constant 8 : i32
    %141 = arith.muli %c3_i32, %c8_i32_57 : i32
    %142 = tpu.assume_multiple %141, 8 : i32
    %c8_i32_58 = arith.constant 8 : i32
    %143 = arith.muli %140, %c8_i32_58 : i32
    %144 = tpu.assume_multiple %143, 8 : i32
    %c0_59 = arith.constant 0 : index
    %c0_60 = arith.constant 0 : index
    %145 = vector.load %arg11[%c0_59, %c0_60] : memref<16x32xf32, #tpu.memory_space<vmem>>, vector<16x32xf32>
    %cst_61 = arith.constant dense<0.000000e+00> : vector<16x256xf32>
    %146 = tpu.matmul %145, %9, %cst_61 {dimension_numbers = #tpu.dot_dimension_numbers<[1], [0], [0], [1], [0, 0, 1, 1], [], []>} : vector<16x32xf32>, vector<32x256xf32>, vector<16x256xf32> -> vector<16x256xf32>
    %147 = vector.extract_strided_slice %146 {offsets = [0, 0], sizes = [8, 128], strides = [1, 1]} : vector<16x256xf32> to vector<8x128xf32>
    %148 = vector.extract_strided_slice %146 {offsets = [8, 128], sizes = [8, 128], strides = [1, 1]} : vector<16x256xf32> to vector<8x128xf32>
    %149 = tpu.concatenate %147, %148 in 0 : vector<8x128xf32>, vector<8x128xf32> -> vector<16x128xf32>
    %150 = arith.index_cast %142 : i32 to index
    %c0_62 = arith.constant 0 : index
    %151 = vector.load %arg10[%150, %c0_62] : memref<64x256xf32, #tpu.memory_space<vmem>>, vector<8x128xf32>
    %152 = arith.index_cast %144 : i32 to index
    %c128_63 = arith.constant 128 : index
    %153 = vector.load %arg10[%152, %c128_63] : memref<64x256xf32, #tpu.memory_space<vmem>>, vector<8x128xf32>
    %154 = tpu.concatenate %151, %153 in 0 : vector<8x128xf32>, vector<8x128xf32> -> vector<16x128xf32>
    %155 = vector.extract_strided_slice %154 {offsets = [0, 0], sizes = [16, 64], strides = [1, 1]} : vector<16x128xf32> to vector<16x64xf32>
    %156 = vector.extract_strided_slice %149 {offsets = [0, 0], sizes = [16, 64], strides = [1, 1]} : vector<16x128xf32> to vector<16x64xf32>
    %157 = arith.addf %155, %156 : vector<16x64xf32>
    %cst_64 = arith.constant 5.000000e-01 : f32
    %158 = vector.broadcast %cst_64 : f32 to vector<16x64xf32>
    %159 = arith.mulf %158, %157 : vector<16x64xf32>
    %160 = math.tanh %159 : vector<16x64xf32>
    %cst_65 = arith.constant 1.000000e+00 : f32
    %161 = vector.broadcast %cst_65 : f32 to vector<16x64xf32>
    %162 = arith.addf %160, %161 : vector<16x64xf32>
    %cst_66 = arith.constant 5.000000e-01 : f32
    %163 = vector.broadcast %cst_66 : f32 to vector<16x64xf32>
    %164 = arith.mulf %163, %162 : vector<16x64xf32>
    %165 = vector.extract_strided_slice %164 {offsets = [0, 0], sizes = [16, 32], strides = [1, 1]} : vector<16x64xf32> to vector<16x32xf32>
    %166 = vector.extract_strided_slice %164 {offsets = [0, 32], sizes = [16, 32], strides = [1, 1]} : vector<16x64xf32> to vector<16x32xf32>
    %167 = vector.extract_strided_slice %154 {offsets = [0, 64], sizes = [16, 32], strides = [1, 1]} : vector<16x128xf32> to vector<16x32xf32>
    %168 = vector.extract_strided_slice %149 {offsets = [0, 64], sizes = [16, 32], strides = [1, 1]} : vector<16x128xf32> to vector<16x32xf32>
    %169 = arith.addf %168, %10 : vector<16x32xf32>
    %170 = arith.mulf %165, %169 : vector<16x32xf32>
    %171 = arith.addf %167, %170 : vector<16x32xf32>
    %172 = math.tanh %171 : vector<16x32xf32>
    %173 = arith.subf %145, %172 : vector<16x32xf32>
    %174 = arith.mulf %166, %173 : vector<16x32xf32>
    %175 = arith.addf %172, %174 : vector<16x32xf32>
    %c0_67 = arith.constant 0 : index
    %c0_68 = arith.constant 0 : index
    %176 = vector.load %arg11[%c0_67, %c0_68] : memref<16x32xf32, #tpu.memory_space<vmem>>, vector<16x32xf32>
    tpu.vector_store %arg11[%c0_67, %c0_68], %175 {strides = array<i32>} : memref<16x32xf32, #tpu.memory_space<vmem>>, vector<16x32xf32>,
    %177 = vector.extract_strided_slice %175 {offsets = [0, 0], sizes = [8, 32], strides = [1, 1]} : vector<16x32xf32> to vector<8x32xf32>
    %178 = arith.index_cast %142 : i32 to index
    %c0_69 = arith.constant 0 : index
    %179 = vector.load %arg12[%178, %c0_69] : memref<64x32xf32, #tpu.memory_space<vmem>>, vector<8x32xf32>
    tpu.vector_store %arg12[%178, %c0_69], %177 {strides = array<i32>} : memref<64x32xf32, #tpu.memory_space<vmem>>, vector<8x32xf32>,
    %180 = vector.extract_strided_slice %175 {offsets = [8, 0], sizes = [8, 32], strides = [1, 1]} : vector<16x32xf32> to vector<8x32xf32>
    %181 = arith.index_cast %144 : i32 to index
    %c0_70 = arith.constant 0 : index
    %182 = vector.load %arg13[%181, %c0_70] : memref<64x32xf32, #tpu.memory_space<vmem>>, vector<8x32xf32>
    tpu.vector_store %arg13[%181, %c0_70], %180 {strides = array<i32>} : memref<64x32xf32, #tpu.memory_space<vmem>>, vector<8x32xf32>,
    %c4_i32 = arith.constant 4 : i32
    %c7_i32_71 = arith.constant 7 : i32
    %183 = arith.subi %c7_i32_71, %c4_i32 : i32
    %c8_i32_72 = arith.constant 8 : i32
    %184 = arith.muli %c4_i32, %c8_i32_72 : i32
    %185 = tpu.assume_multiple %184, 8 : i32
    %c8_i32_73 = arith.constant 8 : i32
    %186 = arith.muli %183, %c8_i32_73 : i32
    %187 = tpu.assume_multiple %186, 8 : i32
    %c0_74 = arith.constant 0 : index
    %c0_75 = arith.constant 0 : index
    %188 = vector.load %arg11[%c0_74, %c0_75] : memref<16x32xf32, #tpu.memory_space<vmem>>, vector<16x32xf32>
    %cst_76 = arith.constant dense<0.000000e+00> : vector<16x256xf32>
    %189 = tpu.matmul %188, %9, %cst_76 {dimension_numbers = #tpu.dot_dimension_numbers<[1], [0], [0], [1], [0, 0, 1, 1], [], []>} : vector<16x32xf32>, vector<32x256xf32>, vector<16x256xf32> -> vector<16x256xf32>
    %190 = vector.extract_strided_slice %189 {offsets = [0, 0], sizes = [8, 128], strides = [1, 1]} : vector<16x256xf32> to vector<8x128xf32>
    %191 = vector.extract_strided_slice %189 {offsets = [8, 128], sizes = [8, 128], strides = [1, 1]} : vector<16x256xf32> to vector<8x128xf32>
    %192 = tpu.concatenate %190, %191 in 0 : vector<8x128xf32>, vector<8x128xf32> -> vector<16x128xf32>
    %193 = arith.index_cast %185 : i32 to index
    %c0_77 = arith.constant 0 : index
    %194 = vector.load %arg10[%193, %c0_77] : memref<64x256xf32, #tpu.memory_space<vmem>>, vector<8x128xf32>
    %195 = arith.index_cast %187 : i32 to index
    %c128_78 = arith.constant 128 : index
    %196 = vector.load %arg10[%195, %c128_78] : memref<64x256xf32, #tpu.memory_space<vmem>>, vector<8x128xf32>
    %197 = tpu.concatenate %194, %196 in 0 : vector<8x128xf32>, vector<8x128xf32> -> vector<16x128xf32>
    %198 = vector.extract_strided_slice %197 {offsets = [0, 0], sizes = [16, 64], strides = [1, 1]} : vector<16x128xf32> to vector<16x64xf32>
    %199 = vector.extract_strided_slice %192 {offsets = [0, 0], sizes = [16, 64], strides = [1, 1]} : vector<16x128xf32> to vector<16x64xf32>
    %200 = arith.addf %198, %199 : vector<16x64xf32>
    %cst_79 = arith.constant 5.000000e-01 : f32
    %201 = vector.broadcast %cst_79 : f32 to vector<16x64xf32>
    %202 = arith.mulf %201, %200 : vector<16x64xf32>
    %203 = math.tanh %202 : vector<16x64xf32>
    %cst_80 = arith.constant 1.000000e+00 : f32
    %204 = vector.broadcast %cst_80 : f32 to vector<16x64xf32>
    %205 = arith.addf %203, %204 : vector<16x64xf32>
    %cst_81 = arith.constant 5.000000e-01 : f32
    %206 = vector.broadcast %cst_81 : f32 to vector<16x64xf32>
    %207 = arith.mulf %206, %205 : vector<16x64xf32>
    %208 = vector.extract_strided_slice %207 {offsets = [0, 0], sizes = [16, 32], strides = [1, 1]} : vector<16x64xf32> to vector<16x32xf32>
    %209 = vector.extract_strided_slice %207 {offsets = [0, 32], sizes = [16, 32], strides = [1, 1]} : vector<16x64xf32> to vector<16x32xf32>
    %210 = vector.extract_strided_slice %197 {offsets = [0, 64], sizes = [16, 32], strides = [1, 1]} : vector<16x128xf32> to vector<16x32xf32>
    %211 = vector.extract_strided_slice %192 {offsets = [0, 64], sizes = [16, 32], strides = [1, 1]} : vector<16x128xf32> to vector<16x32xf32>
    %212 = arith.addf %211, %10 : vector<16x32xf32>
    %213 = arith.mulf %208, %212 : vector<16x32xf32>
    %214 = arith.addf %210, %213 : vector<16x32xf32>
    %215 = math.tanh %214 : vector<16x32xf32>
    %216 = arith.subf %188, %215 : vector<16x32xf32>
    %217 = arith.mulf %209, %216 : vector<16x32xf32>
    %218 = arith.addf %215, %217 : vector<16x32xf32>
    %c0_82 = arith.constant 0 : index
    %c0_83 = arith.constant 0 : index
    %219 = vector.load %arg11[%c0_82, %c0_83] : memref<16x32xf32, #tpu.memory_space<vmem>>, vector<16x32xf32>
    tpu.vector_store %arg11[%c0_82, %c0_83], %218 {strides = array<i32>} : memref<16x32xf32, #tpu.memory_space<vmem>>, vector<16x32xf32>,
    %220 = vector.extract_strided_slice %218 {offsets = [0, 0], sizes = [8, 32], strides = [1, 1]} : vector<16x32xf32> to vector<8x32xf32>
    %221 = arith.index_cast %185 : i32 to index
    %c0_84 = arith.constant 0 : index
    %222 = vector.load %arg12[%221, %c0_84] : memref<64x32xf32, #tpu.memory_space<vmem>>, vector<8x32xf32>
    tpu.vector_store %arg12[%221, %c0_84], %220 {strides = array<i32>} : memref<64x32xf32, #tpu.memory_space<vmem>>, vector<8x32xf32>,
    %223 = vector.extract_strided_slice %218 {offsets = [8, 0], sizes = [8, 32], strides = [1, 1]} : vector<16x32xf32> to vector<8x32xf32>
    %224 = arith.index_cast %187 : i32 to index
    %c0_85 = arith.constant 0 : index
    %225 = vector.load %arg13[%224, %c0_85] : memref<64x32xf32, #tpu.memory_space<vmem>>, vector<8x32xf32>
    tpu.vector_store %arg13[%224, %c0_85], %223 {strides = array<i32>} : memref<64x32xf32, #tpu.memory_space<vmem>>, vector<8x32xf32>,
    %c5_i32 = arith.constant 5 : i32
    %c7_i32_86 = arith.constant 7 : i32
    %226 = arith.subi %c7_i32_86, %c5_i32 : i32
    %c8_i32_87 = arith.constant 8 : i32
    %227 = arith.muli %c5_i32, %c8_i32_87 : i32
    %228 = tpu.assume_multiple %227, 8 : i32
    %c8_i32_88 = arith.constant 8 : i32
    %229 = arith.muli %226, %c8_i32_88 : i32
    %230 = tpu.assume_multiple %229, 8 : i32
    %c0_89 = arith.constant 0 : index
    %c0_90 = arith.constant 0 : index
    %231 = vector.load %arg11[%c0_89, %c0_90] : memref<16x32xf32, #tpu.memory_space<vmem>>, vector<16x32xf32>
    %cst_91 = arith.constant dense<0.000000e+00> : vector<16x256xf32>
    %232 = tpu.matmul %231, %9, %cst_91 {dimension_numbers = #tpu.dot_dimension_numbers<[1], [0], [0], [1], [0, 0, 1, 1], [], []>} : vector<16x32xf32>, vector<32x256xf32>, vector<16x256xf32> -> vector<16x256xf32>
    %233 = vector.extract_strided_slice %232 {offsets = [0, 0], sizes = [8, 128], strides = [1, 1]} : vector<16x256xf32> to vector<8x128xf32>
    %234 = vector.extract_strided_slice %232 {offsets = [8, 128], sizes = [8, 128], strides = [1, 1]} : vector<16x256xf32> to vector<8x128xf32>
    %235 = tpu.concatenate %233, %234 in 0 : vector<8x128xf32>, vector<8x128xf32> -> vector<16x128xf32>
    %236 = arith.index_cast %228 : i32 to index
    %c0_92 = arith.constant 0 : index
    %237 = vector.load %arg10[%236, %c0_92] : memref<64x256xf32, #tpu.memory_space<vmem>>, vector<8x128xf32>
    %238 = arith.index_cast %230 : i32 to index
    %c128_93 = arith.constant 128 : index
    %239 = vector.load %arg10[%238, %c128_93] : memref<64x256xf32, #tpu.memory_space<vmem>>, vector<8x128xf32>
    %240 = tpu.concatenate %237, %239 in 0 : vector<8x128xf32>, vector<8x128xf32> -> vector<16x128xf32>
    %241 = vector.extract_strided_slice %240 {offsets = [0, 0], sizes = [16, 64], strides = [1, 1]} : vector<16x128xf32> to vector<16x64xf32>
    %242 = vector.extract_strided_slice %235 {offsets = [0, 0], sizes = [16, 64], strides = [1, 1]} : vector<16x128xf32> to vector<16x64xf32>
    %243 = arith.addf %241, %242 : vector<16x64xf32>
    %cst_94 = arith.constant 5.000000e-01 : f32
    %244 = vector.broadcast %cst_94 : f32 to vector<16x64xf32>
    %245 = arith.mulf %244, %243 : vector<16x64xf32>
    %246 = math.tanh %245 : vector<16x64xf32>
    %cst_95 = arith.constant 1.000000e+00 : f32
    %247 = vector.broadcast %cst_95 : f32 to vector<16x64xf32>
    %248 = arith.addf %246, %247 : vector<16x64xf32>
    %cst_96 = arith.constant 5.000000e-01 : f32
    %249 = vector.broadcast %cst_96 : f32 to vector<16x64xf32>
    %250 = arith.mulf %249, %248 : vector<16x64xf32>
    %251 = vector.extract_strided_slice %250 {offsets = [0, 0], sizes = [16, 32], strides = [1, 1]} : vector<16x64xf32> to vector<16x32xf32>
    %252 = vector.extract_strided_slice %250 {offsets = [0, 32], sizes = [16, 32], strides = [1, 1]} : vector<16x64xf32> to vector<16x32xf32>
    %253 = vector.extract_strided_slice %240 {offsets = [0, 64], sizes = [16, 32], strides = [1, 1]} : vector<16x128xf32> to vector<16x32xf32>
    %254 = vector.extract_strided_slice %235 {offsets = [0, 64], sizes = [16, 32], strides = [1, 1]} : vector<16x128xf32> to vector<16x32xf32>
    %255 = arith.addf %254, %10 : vector<16x32xf32>
    %256 = arith.mulf %251, %255 : vector<16x32xf32>
    %257 = arith.addf %253, %256 : vector<16x32xf32>
    %258 = math.tanh %257 : vector<16x32xf32>
    %259 = arith.subf %231, %258 : vector<16x32xf32>
    %260 = arith.mulf %252, %259 : vector<16x32xf32>
    %261 = arith.addf %258, %260 : vector<16x32xf32>
    %c0_97 = arith.constant 0 : index
    %c0_98 = arith.constant 0 : index
    %262 = vector.load %arg11[%c0_97, %c0_98] : memref<16x32xf32, #tpu.memory_space<vmem>>, vector<16x32xf32>
    tpu.vector_store %arg11[%c0_97, %c0_98], %261 {strides = array<i32>} : memref<16x32xf32, #tpu.memory_space<vmem>>, vector<16x32xf32>,
    %263 = vector.extract_strided_slice %261 {offsets = [0, 0], sizes = [8, 32], strides = [1, 1]} : vector<16x32xf32> to vector<8x32xf32>
    %264 = arith.index_cast %228 : i32 to index
    %c0_99 = arith.constant 0 : index
    %265 = vector.load %arg12[%264, %c0_99] : memref<64x32xf32, #tpu.memory_space<vmem>>, vector<8x32xf32>
    tpu.vector_store %arg12[%264, %c0_99], %263 {strides = array<i32>} : memref<64x32xf32, #tpu.memory_space<vmem>>, vector<8x32xf32>,
    %266 = vector.extract_strided_slice %261 {offsets = [8, 0], sizes = [8, 32], strides = [1, 1]} : vector<16x32xf32> to vector<8x32xf32>
    %267 = arith.index_cast %230 : i32 to index
    %c0_100 = arith.constant 0 : index
    %268 = vector.load %arg13[%267, %c0_100] : memref<64x32xf32, #tpu.memory_space<vmem>>, vector<8x32xf32>
    tpu.vector_store %arg13[%267, %c0_100], %266 {strides = array<i32>} : memref<64x32xf32, #tpu.memory_space<vmem>>, vector<8x32xf32>,
    %c6_i32 = arith.constant 6 : i32
    %c7_i32_101 = arith.constant 7 : i32
    %269 = arith.subi %c7_i32_101, %c6_i32 : i32
    %c8_i32_102 = arith.constant 8 : i32
    %270 = arith.muli %c6_i32, %c8_i32_102 : i32
    %271 = tpu.assume_multiple %270, 8 : i32
    %c8_i32_103 = arith.constant 8 : i32
    %272 = arith.muli %269, %c8_i32_103 : i32
    %273 = tpu.assume_multiple %272, 8 : i32
    %c0_104 = arith.constant 0 : index
    %c0_105 = arith.constant 0 : index
    %274 = vector.load %arg11[%c0_104, %c0_105] : memref<16x32xf32, #tpu.memory_space<vmem>>, vector<16x32xf32>
    %cst_106 = arith.constant dense<0.000000e+00> : vector<16x256xf32>
    %275 = tpu.matmul %274, %9, %cst_106 {dimension_numbers = #tpu.dot_dimension_numbers<[1], [0], [0], [1], [0, 0, 1, 1], [], []>} : vector<16x32xf32>, vector<32x256xf32>, vector<16x256xf32> -> vector<16x256xf32>
    %276 = vector.extract_strided_slice %275 {offsets = [0, 0], sizes = [8, 128], strides = [1, 1]} : vector<16x256xf32> to vector<8x128xf32>
    %277 = vector.extract_strided_slice %275 {offsets = [8, 128], sizes = [8, 128], strides = [1, 1]} : vector<16x256xf32> to vector<8x128xf32>
    %278 = tpu.concatenate %276, %277 in 0 : vector<8x128xf32>, vector<8x128xf32> -> vector<16x128xf32>
    %279 = arith.index_cast %271 : i32 to index
    %c0_107 = arith.constant 0 : index
    %280 = vector.load %arg10[%279, %c0_107] : memref<64x256xf32, #tpu.memory_space<vmem>>, vector<8x128xf32>
    %281 = arith.index_cast %273 : i32 to index
    %c128_108 = arith.constant 128 : index
    %282 = vector.load %arg10[%281, %c128_108] : memref<64x256xf32, #tpu.memory_space<vmem>>, vector<8x128xf32>
    %283 = tpu.concatenate %280, %282 in 0 : vector<8x128xf32>, vector<8x128xf32> -> vector<16x128xf32>
    %284 = vector.extract_strided_slice %283 {offsets = [0, 0], sizes = [16, 64], strides = [1, 1]} : vector<16x128xf32> to vector<16x64xf32>
    %285 = vector.extract_strided_slice %278 {offsets = [0, 0], sizes = [16, 64], strides = [1, 1]} : vector<16x128xf32> to vector<16x64xf32>
    %286 = arith.addf %284, %285 : vector<16x64xf32>
    %cst_109 = arith.constant 5.000000e-01 : f32
    %287 = vector.broadcast %cst_109 : f32 to vector<16x64xf32>
    %288 = arith.mulf %287, %286 : vector<16x64xf32>
    %289 = math.tanh %288 : vector<16x64xf32>
    %cst_110 = arith.constant 1.000000e+00 : f32
    %290 = vector.broadcast %cst_110 : f32 to vector<16x64xf32>
    %291 = arith.addf %289, %290 : vector<16x64xf32>
    %cst_111 = arith.constant 5.000000e-01 : f32
    %292 = vector.broadcast %cst_111 : f32 to vector<16x64xf32>
    %293 = arith.mulf %292, %291 : vector<16x64xf32>
    %294 = vector.extract_strided_slice %293 {offsets = [0, 0], sizes = [16, 32], strides = [1, 1]} : vector<16x64xf32> to vector<16x32xf32>
    %295 = vector.extract_strided_slice %293 {offsets = [0, 32], sizes = [16, 32], strides = [1, 1]} : vector<16x64xf32> to vector<16x32xf32>
    %296 = vector.extract_strided_slice %283 {offsets = [0, 64], sizes = [16, 32], strides = [1, 1]} : vector<16x128xf32> to vector<16x32xf32>
    %297 = vector.extract_strided_slice %278 {offsets = [0, 64], sizes = [16, 32], strides = [1, 1]} : vector<16x128xf32> to vector<16x32xf32>
    %298 = arith.addf %297, %10 : vector<16x32xf32>
    %299 = arith.mulf %294, %298 : vector<16x32xf32>
    %300 = arith.addf %296, %299 : vector<16x32xf32>
    %301 = math.tanh %300 : vector<16x32xf32>
    %302 = arith.subf %274, %301 : vector<16x32xf32>
    %303 = arith.mulf %295, %302 : vector<16x32xf32>
    %304 = arith.addf %301, %303 : vector<16x32xf32>
    %c0_112 = arith.constant 0 : index
    %c0_113 = arith.constant 0 : index
    %305 = vector.load %arg11[%c0_112, %c0_113] : memref<16x32xf32, #tpu.memory_space<vmem>>, vector<16x32xf32>
    tpu.vector_store %arg11[%c0_112, %c0_113], %304 {strides = array<i32>} : memref<16x32xf32, #tpu.memory_space<vmem>>, vector<16x32xf32>,
    %306 = vector.extract_strided_slice %304 {offsets = [0, 0], sizes = [8, 32], strides = [1, 1]} : vector<16x32xf32> to vector<8x32xf32>
    %307 = arith.index_cast %271 : i32 to index
    %c0_114 = arith.constant 0 : index
    %308 = vector.load %arg12[%307, %c0_114] : memref<64x32xf32, #tpu.memory_space<vmem>>, vector<8x32xf32>
    tpu.vector_store %arg12[%307, %c0_114], %306 {strides = array<i32>} : memref<64x32xf32, #tpu.memory_space<vmem>>, vector<8x32xf32>,
    %309 = vector.extract_strided_slice %304 {offsets = [8, 0], sizes = [8, 32], strides = [1, 1]} : vector<16x32xf32> to vector<8x32xf32>
    %310 = arith.index_cast %273 : i32 to index
    %c0_115 = arith.constant 0 : index
    %311 = vector.load %arg13[%310, %c0_115] : memref<64x32xf32, #tpu.memory_space<vmem>>, vector<8x32xf32>
    tpu.vector_store %arg13[%310, %c0_115], %309 {strides = array<i32>} : memref<64x32xf32, #tpu.memory_space<vmem>>, vector<8x32xf32>,
    %c7_i32_116 = arith.constant 7 : i32
    %c7_i32_117 = arith.constant 7 : i32
    %312 = arith.subi %c7_i32_117, %c7_i32_116 : i32
    %c8_i32_118 = arith.constant 8 : i32
    %313 = arith.muli %c7_i32_116, %c8_i32_118 : i32
    %314 = tpu.assume_multiple %313, 8 : i32
    %c8_i32_119 = arith.constant 8 : i32
    %315 = arith.muli %312, %c8_i32_119 : i32
    %316 = tpu.assume_multiple %315, 8 : i32
    %c0_120 = arith.constant 0 : index
    %c0_121 = arith.constant 0 : index
    %317 = vector.load %arg11[%c0_120, %c0_121] : memref<16x32xf32, #tpu.memory_space<vmem>>, vector<16x32xf32>
    %cst_122 = arith.constant dense<0.000000e+00> : vector<16x256xf32>
    %318 = tpu.matmul %317, %9, %cst_122 {dimension_numbers = #tpu.dot_dimension_numbers<[1], [0], [0], [1], [0, 0, 1, 1], [], []>} : vector<16x32xf32>, vector<32x256xf32>, vector<16x256xf32> -> vector<16x256xf32>
    %319 = vector.extract_strided_slice %318 {offsets = [0, 0], sizes = [8, 128], strides = [1, 1]} : vector<16x256xf32> to vector<8x128xf32>
    %320 = vector.extract_strided_slice %318 {offsets = [8, 128], sizes = [8, 128], strides = [1, 1]} : vector<16x256xf32> to vector<8x128xf32>
    %321 = tpu.concatenate %319, %320 in 0 : vector<8x128xf32>, vector<8x128xf32> -> vector<16x128xf32>
    %322 = arith.index_cast %314 : i32 to index
    %c0_123 = arith.constant 0 : index
    %323 = vector.load %arg10[%322, %c0_123] : memref<64x256xf32, #tpu.memory_space<vmem>>, vector<8x128xf32>
    %324 = arith.index_cast %316 : i32 to index
    %c128_124 = arith.constant 128 : index
    %325 = vector.load %arg10[%324, %c128_124] : memref<64x256xf32, #tpu.memory_space<vmem>>, vector<8x128xf32>
    %326 = tpu.concatenate %323, %325 in 0 : vector<8x128xf32>, vector<8x128xf32> -> vector<16x128xf32>
    %327 = vector.extract_strided_slice %326 {offsets = [0, 0], sizes = [16, 64], strides = [1, 1]} : vector<16x128xf32> to vector<16x64xf32>
    %328 = vector.extract_strided_slice %321 {offsets = [0, 0], sizes = [16, 64], strides = [1, 1]} : vector<16x128xf32> to vector<16x64xf32>
    %329 = arith.addf %327, %328 : vector<16x64xf32>
    %cst_125 = arith.constant 5.000000e-01 : f32
    %330 = vector.broadcast %cst_125 : f32 to vector<16x64xf32>
    %331 = arith.mulf %330, %329 : vector<16x64xf32>
    %332 = math.tanh %331 : vector<16x64xf32>
    %cst_126 = arith.constant 1.000000e+00 : f32
    %333 = vector.broadcast %cst_126 : f32 to vector<16x64xf32>
    %334 = arith.addf %332, %333 : vector<16x64xf32>
    %cst_127 = arith.constant 5.000000e-01 : f32
    %335 = vector.broadcast %cst_127 : f32 to vector<16x64xf32>
    %336 = arith.mulf %335, %334 : vector<16x64xf32>
    %337 = vector.extract_strided_slice %336 {offsets = [0, 0], sizes = [16, 32], strides = [1, 1]} : vector<16x64xf32> to vector<16x32xf32>
    %338 = vector.extract_strided_slice %336 {offsets = [0, 32], sizes = [16, 32], strides = [1, 1]} : vector<16x64xf32> to vector<16x32xf32>
    %339 = vector.extract_strided_slice %326 {offsets = [0, 64], sizes = [16, 32], strides = [1, 1]} : vector<16x128xf32> to vector<16x32xf32>
    %340 = vector.extract_strided_slice %321 {offsets = [0, 64], sizes = [16, 32], strides = [1, 1]} : vector<16x128xf32> to vector<16x32xf32>
    %341 = arith.addf %340, %10 : vector<16x32xf32>
    %342 = arith.mulf %337, %341 : vector<16x32xf32>
    %343 = arith.addf %339, %342 : vector<16x32xf32>
    %344 = math.tanh %343 : vector<16x32xf32>
    %345 = arith.subf %317, %344 : vector<16x32xf32>
    %346 = arith.mulf %338, %345 : vector<16x32xf32>
    %347 = arith.addf %344, %346 : vector<16x32xf32>
    %c0_128 = arith.constant 0 : index
    %c0_129 = arith.constant 0 : index
    %348 = vector.load %arg11[%c0_128, %c0_129] : memref<16x32xf32, #tpu.memory_space<vmem>>, vector<16x32xf32>
    tpu.vector_store %arg11[%c0_128, %c0_129], %347 {strides = array<i32>} : memref<16x32xf32, #tpu.memory_space<vmem>>, vector<16x32xf32>,
    %349 = vector.extract_strided_slice %347 {offsets = [0, 0], sizes = [8, 32], strides = [1, 1]} : vector<16x32xf32> to vector<8x32xf32>
    %350 = arith.index_cast %314 : i32 to index
    %c0_130 = arith.constant 0 : index
    %351 = vector.load %arg12[%350, %c0_130] : memref<64x32xf32, #tpu.memory_space<vmem>>, vector<8x32xf32>
    tpu.vector_store %arg12[%350, %c0_130], %349 {strides = array<i32>} : memref<64x32xf32, #tpu.memory_space<vmem>>, vector<8x32xf32>,
    %352 = vector.extract_strided_slice %347 {offsets = [8, 0], sizes = [8, 32], strides = [1, 1]} : vector<16x32xf32> to vector<8x32xf32>
    %353 = arith.index_cast %316 : i32 to index
    %c0_131 = arith.constant 0 : index
    %354 = vector.load %arg13[%353, %c0_131] : memref<64x32xf32, #tpu.memory_space<vmem>>, vector<8x32xf32>
    tpu.vector_store %arg13[%353, %c0_131], %352 {strides = array<i32>} : memref<64x32xf32, #tpu.memory_space<vmem>>, vector<8x32xf32>,
    %c8_i32_132 = arith.constant 8 : i32
    %c0_133 = arith.constant 0 : index
    %c0_134 = arith.constant 0 : index
    %355 = vector.load %arg12[%c0_133, %c0_134] : memref<64x32xf32, #tpu.memory_space<vmem>>, vector<64x32xf32>
    %c0_135 = arith.constant 0 : index
    %c0_136 = arith.constant 0 : index
    %356 = vector.load %arg6[%c0_135, %c0_136] : memref<32x128xf32, #tpu.memory_space<vmem>>, vector<32x128xf32>
    %cst_137 = arith.constant dense<0.000000e+00> : vector<64x128xf32>
    %357 = tpu.matmul %355, %356, %cst_137 {dimension_numbers = #tpu.dot_dimension_numbers<[1], [0], [0], [1], [0, 0, 1, 1], [], []>} : vector<64x32xf32>, vector<32x128xf32>, vector<64x128xf32> -> vector<64x128xf32>
    %c0_138 = arith.constant 0 : index
    %c0_139 = arith.constant 0 : index
    %358 = vector.load %arg13[%c0_138, %c0_139] : memref<64x32xf32, #tpu.memory_space<vmem>>, vector<64x32xf32>
    %c0_140 = arith.constant 0 : index
    %c0_141 = arith.constant 0 : index
    %359 = vector.load %arg7[%c0_140, %c0_141] : memref<32x128xf32, #tpu.memory_space<vmem>>, vector<32x128xf32>
    %cst_142 = arith.constant dense<0.000000e+00> : vector<64x128xf32>
    %360 = tpu.matmul %358, %359, %cst_142 {dimension_numbers = #tpu.dot_dimension_numbers<[1], [0], [0], [1], [0, 0, 1, 1], [], []>} : vector<64x32xf32>, vector<32x128xf32>, vector<64x128xf32> -> vector<64x128xf32>
    %361 = arith.addf %357, %360 : vector<64x128xf32>
    %c0_143 = arith.constant 0 : index
    %c0_144 = arith.constant 0 : index
    %362 = vector.load %arg8[%c0_143, %c0_144] : memref<1x128xf32, #tpu.memory_space<vmem>>, vector<1x128xf32>
    %363 = vector.broadcast %362 : vector<1x128xf32> to vector<64x128xf32>
    %364 = arith.addf %361, %363 : vector<64x128xf32>
    %c0_145 = arith.constant 0 : index
    %c0_146 = arith.constant 0 : index
    %365 = vector.load %arg9[%c0_145, %c0_146] : memref<64x128xf32, #tpu.memory_space<vmem>>, vector<64x128xf32>
    tpu.vector_store %arg9[%c0_145, %c0_146], %364 {strides = array<i32>} : memref<64x128xf32, #tpu.memory_space<vmem>>, vector<64x128xf32>,
    return
  }
  func.func @transform_0(%arg0: i32) -> (i32, i32) {
    %c0_i32 = arith.constant 0 : i32
    %c0_i32_0 = arith.constant 0 : i32
    %c0_i32_1 = arith.constant 0 : i32
    return %c0_i32, %c0_i32_0 : i32, i32
  }
  func.func @transform_1(%arg0: i32) -> (i32, i32) {
    %c0_i32 = arith.constant 0 : i32
    %c0_i32_0 = arith.constant 0 : i32
    %c0_i32_1 = arith.constant 0 : i32
    return %c0_i32, %c0_i32_0 : i32, i32
  }
  func.func @transform_2(%arg0: i32) -> (i32, i32) {
    %c0_i32 = arith.constant 0 : i32
    %c0_i32_0 = arith.constant 0 : i32
    %c0_i32_1 = arith.constant 0 : i32
    return %c0_i32, %c0_i32_0 : i32, i32
  }
  func.func @transform_3(%arg0: i32) -> (i32, i32) {
    %c0_i32 = arith.constant 0 : i32
    %c0_i32_0 = arith.constant 0 : i32
    %c0_i32_1 = arith.constant 0 : i32
    return %c0_i32, %c0_i32_0 : i32, i32
  }
  func.func @transform_4(%arg0: i32) -> (i32, i32) {
    %c0_i32 = arith.constant 0 : i32
    %c0_i32_0 = arith.constant 0 : i32
    %c0_i32_1 = arith.constant 0 : i32
    return %c0_i32, %c0_i32_0 : i32, i32
  }
  func.func @transform_5(%arg0: i32) -> (i32, i32) {
    %c0_i32 = arith.constant 0 : i32
    %c0_i32_0 = arith.constant 0 : i32
    %c0_i32_1 = arith.constant 0 : i32
    return %c0_i32, %c0_i32_0 : i32, i32
  }
  func.func @transform_6(%arg0: i32) -> (i32, i32) {
    %c0_i32 = arith.constant 0 : i32
    %c0_i32_0 = arith.constant 0 : i32
    %c0_i32_1 = arith.constant 0 : i32
    return %c0_i32, %c0_i32_0 : i32, i32
  }
  func.func @transform_7(%arg0: i32) -> (i32, i32) {
    %c0_i32 = arith.constant 0 : i32
    %c0_i32_0 = arith.constant 0 : i32
    %c0_i32_1 = arith.constant 0 : i32
    return %c0_i32, %c0_i32_0 : i32, i32
  }
  func.func @transform_8(%arg0: i32) -> (i32, i32) {
    %c0_i32 = arith.constant 0 : i32
    %c0_i32_0 = arith.constant 0 : i32
    %c0_i32_1 = arith.constant 0 : i32
    return %c0_i32, %c0_i32_0 : i32, i32
  }
}

</mosaic_0001>

<llo_original>
// kernel: tpu_custom_call.1
$region0: #{tpu_custom_call.1}
  #allocation0 [shape = 'u32[]', space=smem, size = 0x4, offset = 0x4, fixed_abs, tag = 'smem constant byte address 0x4 - core index']
  #allocation1 [shape = 'u32[144,128]{1,0:T(1,128)}', space=vmem, size = 0x12000, scoped, tag = 'internal scratch']
  #allocation2 [shape = 'f32[64,256]{1,0:T(8,128)}', space=vmem, size = 0x10000, scoped, tag = 'scratch operand']
  #allocation3 [shape = 'f32[16,32]{1,0:T(8,128)}', space=vmem, size = 0x2000, scoped, tag = 'scratch operand']
  #allocation4 [shape = 'f32[64,32]{1,0:T(8,128)}', space=vmem, size = 0x8000, scoped, tag = 'scratch operand']
  #allocation5 [shape = 'f32[64,32]{1,0:T(8,128)}', space=vmem, size = 0x8000, scoped, tag = 'scratch operand']
  %s0 = inlined_call_operand.vmem [shape: f32[64,16], index: 0, kind: input, shape index: {}]
  %s1 = inlined_call_operand.hbm [shape: f32[16,256], index: 1, kind: input, shape index: {}]
  %s2 = inlined_call_operand.vmem [shape: f32[1,256], index: 2, kind: input, shape index: {}]
  %s3 = inlined_call_operand.vmem [shape: f32[32,256], index: 3, kind: input, shape index: {}]
  %s4 = inlined_call_operand.vmem [shape: f32[16,32], index: 4, kind: input, shape index: {}]
  %s5 = inlined_call_operand.hbm [shape: f32[32,128], index: 5, kind: input, shape index: {}]
  %s6 = inlined_call_operand.hbm [shape: f32[32,128], index: 6, kind: input, shape index: {}]
  %s7 = inlined_call_operand.vmem [shape: f32[1,128], index: 7, kind: input, shape index: {}]
  %s8 = inlined_call_operand.hbm [shape: f32[64,128], index: 8, kind: output, shape index: {}]
  %s9 = sld [smem:[#allocation0]]
  $region54: #{tpu_custom_call.1} parent=0
    _
  %s11 = ssub.s32 1, %s9
  %s12 = scalar_select 0, %s11, %s9
  $region1: #{tpu_custom_call.1} parent=0
    #allocation6 [shape = 'u8[16384]{0}', space=vmem, size = 0x4000, scoped, tag = 'input window, operand 1, single buffered']
    #allocation7 [shape = 's32[1]{0}', space=sflag, size = 0x4, scoped, tag = 'scoped memory for tpu_custom_call.1']
    #allocation8 [shape = 's32[1]{0}', space=sflag, size = 0x4, scoped, tag = 'scoped memory for tpu_custom_call.1']
    #allocation9 [shape = 'u8[16384]{0}', space=vmem, size = 0x4000, scoped, tag = 'input window, operand 5, single buffered']
    #allocation10 [shape = 's32[1]{0}', space=sflag, size = 0x4, scoped, tag = 'scoped memory for tpu_custom_call.1']
    #allocation11 [shape = 'u8[16384]{0}', space=vmem, size = 0x4000, scoped, tag = 'input window, operand 6, single buffered']
    #allocation12 [shape = 'u8[32768]{0}', space=vmem, size = 0x8000, scoped, tag = 'output window, operand 0, single buffered']
    %13 = vsyncpa [#allocation7], 0
    %14 = vsyncpa [#allocation10], 0
    %15 = vsyncpa [#allocation8], 0
    // Predicated region
    $region2: #{tpu_custom_call.1} parent=1 // pred_check
      _
    $region3: #{tpu_custom_call.1} parent=1 // pred_check_branch
      %17 = sbr.rel (0) target = $region5
    $region4: #{tpu_custom_call.1} parent=1 // pred_region
      _
    $region5: #{tpu_custom_call.1} parent=1 // pred_fallthru
      _
    // Predicated region
    $region6: #{tpu_custom_call.1} parent=1 // pred_check
      _
    $region7: #{tpu_custom_call.1} parent=1 // pred_check_branch
      %19 = sbr.rel (0) target = $region9
    $region8: #{tpu_custom_call.1} parent=1 // pred_region
      %s21 = ssub.s32 512, 512
      %22 = vsyncadd [#allocation7], %s21
      %s23 = sshll.u32 [#allocation6], 4
      %s24 = int_to_ptr.vmem [resolvable:$true] %s23
      %29 = dma.hbm_to_vmem [thread:$0]  %s1, 512, %s24, [#allocation7], 256, 256, 16
    $region9: #{tpu_custom_call.1} parent=1 // pred_fallthru
      _
    // Predicated region
    $region10: #{tpu_custom_call.1} parent=1 // pred_check
      _
    $region11: #{tpu_custom_call.1} parent=1 // pred_check_branch
      %31 = sbr.rel (0) target = $region13
    $region12: #{tpu_custom_call.1} parent=1 // pred_region
      _
    $region13: #{tpu_custom_call.1} parent=1 // pred_fallthru
      _
    // Predicated region
    $region14: #{tpu_custom_call.1} parent=1 // pred_check
      _
    $region15: #{tpu_custom_call.1} parent=1 // pred_check_branch
      %33 = sbr.rel (0) target = $region17
    $region16: #{tpu_custom_call.1} parent=1 // pred_region
      _
    $region17: #{tpu_custom_call.1} parent=1 // pred_fallthru
      _
    // Predicated region
    $region18: #{tpu_custom_call.1} parent=1 // pred_check
      _
    $region19: #{tpu_custom_call.1} parent=1 // pred_check_branch
      %35 = sbr.rel (0) target = $region21
    $region20: #{tpu_custom_call.1} parent=1 // pred_region
      _
    $region21: #{tpu_custom_call.1} parent=1 // pred_fallthru
      _
    // Predicated region
    $region22: #{tpu_custom_call.1} parent=1 // pred_check
      _
    $region23: #{tpu_custom_call.1} parent=1 // pred_check_branch
      %37 = sbr.rel (0) target = $region25
    $region24: #{tpu_custom_call.1} parent=1 // pred_region
      %s39 = ssub.s32 512, 512
      %40 = vsyncadd [#allocation10], %s39
      %s41 = sshll.u32 [#allocation9], 4
      %s42 = int_to_ptr.vmem [resolvable:$true] %s41
      %47 = dma.hbm_to_vmem [thread:$0]  %s5, 512, %s42, [#allocation10], 128, 128, 8
    $region25: #{tpu_custom_call.1} parent=1 // pred_fallthru
      _
    // Predicated region
    $region26: #{tpu_custom_call.1} parent=1 // pred_check
      _
    $region27: #{tpu_custom_call.1} parent=1 // pred_check_branch
      %49 = sbr.rel (0) target = $region29
    $region28: #{tpu_custom_call.1} parent=1 // pred_region
      %s51 = ssub.s32 512, 512
      %52 = vsyncadd [#allocation10], %s51
      %s53 = sshll.u32 [#allocation11], 4
      %s54 = int_to_ptr.vmem [resolvable:$true] %s53
      %59 = dma.hbm_to_vmem [thread:$0]  %s6, 512, %s54, [#allocation10], 128, 128, 8
    $region29: #{tpu_custom_call.1} parent=1 // pred_fallthru
      _
    // Predicated region
    $region30: #{tpu_custom_call.1} parent=1 // pred_check
      _
    $region31: #{tpu_custom_call.1} parent=1 // pred_check_branch
      %61 = sbr.rel (0) target = $region33
    $region32: #{tpu_custom_call.1} parent=1 // pred_region
      _
    $region33: #{tpu_custom_call.1} parent=1 // pred_fallthru
      _
    // Predicated region
    $region34: #{tpu_custom_call.1} parent=1 // pred_check
      _
    $region35: #{tpu_custom_call.1} parent=1 // pred_check_branch
      %63 = sbr.rel (0) target = $region37
    $region36: #{tpu_custom_call.1} parent=1 // pred_region
      %64 = dma.done [#allocation7], 512
    $region37: #{tpu_custom_call.1} parent=1 // pred_fallthru
      _
    // Predicated region
    $region38: #{tpu_custom_call.1} parent=1 // pred_check
      _
    $region39: #{tpu_custom_call.1} parent=1 // pred_check_branch
      %66 = sbr.rel (0) target = $region41
    $region40: #{tpu_custom_call.1} parent=1 // pred_region
      %67 = dma.done [#allocation10], 512
    $region41: #{tpu_custom_call.1} parent=1 // pred_fallthru
      _
    // Predicated region
    $region42: #{tpu_custom_call.1} parent=1 // pred_check
      _
    $region43: #{tpu_custom_call.1} parent=1 // pred_check_branch
      %69 = sbr.rel (0) target = $region45
    $region44: #{tpu_custom_call.1} parent=1 // pred_region
      %70 = dma.done [#allocation10], 512
    $region45: #{tpu_custom_call.1} parent=1 // pred_fallthru
      _
    %v71 = vld [vmem:[%s0] sm:$0xff]
    %v72 = vld [vmem:[%s0 + $0x8] sm:$0xff]
    %v73 = vld [vmem:[%s0 + $0x10] sm:$0xff]
    %v74 = vld [vmem:[%s0 + $0x18] sm:$0xff]
    %v75 = vld [vmem:[%s0 + $0x20] sm:$0xff]
    %v76 = vld [vmem:[%s0 + $0x28] sm:$0xff]
    %v77 = vld [vmem:[%s0 + $0x30] sm:$0xff]
    %v78 = vld [vmem:[%s0 + $0x38] sm:$0xff]
    %v79 = vld [vmem:[#allocation6] sm:$0xff]
    %v80 = vld [vmem:[#allocation6 + $0x8] sm:$0xff]
    %v81 = vld [vmem:[#allocation6 + $0x10] sm:$0xff]
    %v82 = vld [vmem:[#allocation6 + $0x18] sm:$0xff]
    %v83 = vld [vmem:[%s2] sm:$0x3]
    %v85 = vlaneseq
    %v86 = vshrl.u32 %v85, 7
    %v87 = vsub.s32 0, %v86
    %v88 = vrot.slane %v83, %v87
    %v89 = vlaneseq
    %v90 = vshrl.u32 %v89, 7
    %v91 = vsub.s32 1, %v90
    %v92 = vrot.slane %v83, %v91
    %vm95 = vcmask 130048
    %v97 = vsel %vm95, %v71, 0
    %v100 = vsel %vm95, %v72, 0
    %v103 = vsel %vm95, %v73, 0
    %v106 = vsel %vm95, %v74, 0
    %v109 = vsel %vm95, %v75, 0
    %v112 = vsel %vm95, %v76, 0
    %v115 = vsel %vm95, %v77, 0
    %v118 = vsel %vm95, %v78, 0
    %120 = vmatprep.subr.mxu0 0.0
    %121 = vmatpush1.msra.mxu0 0.0
    %122 = vmatprep.subr.mxu0 0.0
    %123 = vmatpush1.msra.mxu0 0.0
    %124 = vmatprep.subr.mxu0 0.0
    %125 = vmatpush1.msra.mxu0 0.0
    %126 = vmatprep.subr.mxu0 0.0
    %127 = vmatpush1.msra.mxu0 0.0
    %128 = vmatprep.subr.mxu0 0.0
    %129 = vmatpush1.msra.mxu0 0.0
    %130 = vmatprep.subr.mxu0 0.0
    %131 = vmatpush1.msra.mxu0 0.0
    %132 = vmatprep.subr.mxu0 0.0
    %133 = vmatpush1.msra.mxu0 0.0
    %134 = vmatprep.subr.mxu0 0.0
    %135 = vmatpush1.msra.mxu0 0.0
    %136 = vmatprep.subr.mxu0 0.0
    %137 = vmatpush1.msra.mxu0 0.0
    %138 = vmatprep.subr.mxu0 0.0
    %139 = vmatpush1.msra.mxu0 0.0
    %140 = vmatprep.subr.mxu0 0.0
    %141 = vmatpush1.msra.mxu0 0.0
    %142 = vmatprep.subr.mxu0 0.0
    %143 = vmatpush1.msra.mxu0 0.0
    %144 = vmatprep.subr.mxu0 0.0
    %145 = vmatpush1.msra.mxu0 0.0
    %146 = vmatprep.subr.mxu0 0.0
    %147 = vmatpush1.msra.mxu0 0.0
    %148 = vmatprep.subr.mxu0 %v82
    %149 = vmatpush1.msra.mxu0 %v81
    %150 = vmatprep.subr.mxu0 %v80
    %151 = vmatpush1.msra.mxu0 %v79
    %152 = vmatprep.subr.mxu0 0.0
    %153 = vmatpush2.msra.mxu0 0.0
    %154 = vmatprep.subr.mxu0 0.0
    %155 = vmatpush2.msra.mxu0 0.0
    %156 = vmatprep.subr.mxu0 0.0
    %157 = vmatpush2.msra.mxu0 0.0
    %158 = vmatprep.subr.mxu0 0.0
    %159 = vmatpush2.msra.mxu0 0.0
    %160 = vmatprep.subr.mxu0 0.0
    %161 = vmatpush2.msra.mxu0 0.0
    %162 = vmatprep.subr.mxu0 0.0
    %163 = vmatpush2.msra.mxu0 0.0
    %164 = vmatprep.subr.mxu0 0.0
    %165 = vmatpush2.msra.mxu0 0.0
    %166 = vmatprep.subr.mxu0 0.0
    %167 = vmatpush2.msra.mxu0 0.0
    %168 = vmatprep.subr.mxu0 0.0
    %169 = vmatpush2.msra.mxu0 0.0
    %170 = vmatprep.subr.mxu0 0.0
    %171 = vmatpush2.msra.mxu0 0.0
    %172 = vmatprep.subr.mxu0 0.0
    %173 = vmatpush2.msra.mxu0 0.0
    %174 = vmatprep.subr.mxu0 0.0
    %175 = vmatpush2.msra.mxu0 0.0
    %176 = vmatprep.subr.mxu0 0.0
    %177 = vmatpush2.msra.mxu0 0.0
    %178 = vmatprep.subr.mxu0 0.0
    %179 = vmatpush2.msra.mxu0 0.0
    %180 = vmatprep.subr.mxu0 0.0
    %181 = vmatpush2.msra.mxu0 0.0
    %182 = vmatprep.subr.mxu0 0.0
    %183 = vmatpush2.msra.mxu0 0.0
    %184 = vmatprep.mubr.f32.mxu0 0.0
    %185 = vmatmul.mubr.f32.gmra.mxu0 %v97
    %v186 = vpop.f32.mrf.mxu0
    %v187 = vadd.f32 %v88, %v186
    %v188 = vpop.f32.mrf.mxu0
    %v189 = vadd.f32 %v92, %v188
    %190 = vmatprep.mubr.f32.mxu0 0.0
    %191 = vmatmul.mubr.f32.gmra.mxu0 %v100
    %v192 = vpop.f32.mrf.mxu0
    %v193 = vadd.f32 %v88, %v192
    %v194 = vpop.f32.mrf.mxu0
    %v195 = vadd.f32 %v92, %v194
    %196 = vmatprep.mubr.f32.mxu0 0.0
    %197 = vmatmul.mubr.f32.gmra.mxu0 %v103
    %v198 = vpop.f32.mrf.mxu0
    %v199 = vadd.f32 %v88, %v198
    %v200 = vpop.f32.mrf.mxu0
    %v201 = vadd.f32 %v92, %v200
    %202 = vmatprep.mubr.f32.mxu0 0.0
    %203 = vmatmul.mubr.f32.gmra.mxu0 %v106
    %v204 = vpop.f32.mrf.mxu0
    %v205 = vadd.f32 %v88, %v204
    %v206 = vpop.f32.mrf.mxu0
    %v207 = vadd.f32 %v92, %v206
    %208 = vmatprep.mubr.f32.mxu0 0.0
    %209 = vmatmul.mubr.f32.gmra.mxu0 %v109
    %v210 = vpop.f32.mrf.mxu0
    %v211 = vadd.f32 %v88, %v210
    %v212 = vpop.f32.mrf.mxu0
    %v213 = vadd.f32 %v92, %v212
    %214 = vmatprep.mubr.f32.mxu0 0.0
    %215 = vmatmul.mubr.f32.gmra.mxu0 %v112
    %v216 = vpop.f32.mrf.mxu0
    %v217 = vadd.f32 %v88, %v216
    %v218 = vpop.f32.mrf.mxu0
    %v219 = vadd.f32 %v92, %v218
    %220 = vmatprep.mubr.f32.mxu0 0.0
    %221 = vmatmul.mubr.f32.gmra.mxu0 %v115
    %v222 = vpop.f32.mrf.mxu0
    %v223 = vadd.f32 %v88, %v222
    %v224 = vpop.f32.mrf.mxu0
    %v225 = vadd.f32 %v92, %v224
    %226 = vmatprep.mubr.f32.mxu0 0.0
    %227 = vmatmul.mubr.f32.gmra.mxu0 %v118
    %v228 = vpop.f32.mrf.mxu0
    %v229 = vadd.f32 %v88, %v228
    %v230 = vpop.f32.mrf.mxu0
    %v231 = vadd.f32 %v92, %v230
    %232 = vdwg.mxu0
    %233 = vst [vmem:[#allocation2] sm:$0xff] %v187
    %234 = vst [vmem:[#allocation2 + $0x8] sm:$0xff] %v189
    %235 = vst [vmem:[#allocation2 + $0x10] sm:$0xff] %v193
    %236 = vst [vmem:[#allocation2 + $0x18] sm:$0xff] %v195
    %237 = vst [vmem:[#allocation2 + $0x20] sm:$0xff] %v199
    %238 = vst [vmem:[#allocation2 + $0x28] sm:$0xff] %v201
    %239 = vst [vmem:[#allocation2 + $0x30] sm:$0xff] %v205
    %240 = vst [vmem:[#allocation2 + $0x38] sm:$0xff] %v207
    %241 = vst [vmem:[#allocation2 + $0x40] sm:$0xff] %v211
    %242 = vst [vmem:[#allocation2 + $0x48] sm:$0xff] %v213
    %243 = vst [vmem:[#allocation2 + $0x50] sm:$0xff] %v217
    %244 = vst [vmem:[#allocation2 + $0x58] sm:$0xff] %v219
    %245 = vst [vmem:[#allocation2 + $0x60] sm:$0xff] %v223
    %246 = vst [vmem:[#allocation2 + $0x68] sm:$0xff] %v225
    %247 = vst [vmem:[#allocation2 + $0x70] sm:$0xff] %v229
    %248 = vst [vmem:[#allocation2 + $0x78] sm:$0xff] %v231
    %vm249 = vcmask 261120
    %250 = vst.msk [vmem:[#allocation3] sm:$0xff] %vm249, 0.0
    %251 = vst.msk [vmem:[#allocation3 + $0x8] sm:$0xff] %vm249, 0.0
    %v252 = vld [vmem:[%s3] sm:$0xff]
    %v253 = vld [vmem:[%s3 + $0x8] sm:$0xff]
    %v254 = vld [vmem:[%s3 + $0x10] sm:$0xff]
    %v255 = vld [vmem:[%s3 + $0x18] sm:$0xff]
    %v256 = vld [vmem:[%s3 + $0x20] sm:$0xff]
    %v257 = vld [vmem:[%s3 + $0x28] sm:$0xff]
    %v258 = vld [vmem:[%s3 + $0x30] sm:$0xff]
    %v259 = vld [vmem:[%s3 + $0x38] sm:$0xff]
    %v260 = vld [vmem:[%s4] sm:$0xff]
    %v261 = vld [vmem:[%s4 + $0x8] sm:$0xff]
    %v262 = vld [vmem:[#allocation3] sm:$0xff]
    %v263 = vld [vmem:[#allocation3 + $0x8] sm:$0xff]
    %v265 = vsel %vm249, %v262, 0
    %v268 = vsel %vm249, %v263, 0
    %270 = vmatprep.subr.mxu0 0.0
    %271 = vmatpush1.msra.mxu0 0.0
    %272 = vmatprep.subr.mxu0 0.0
    %273 = vmatpush1.msra.mxu0 0.0
    %274 = vmatprep.subr.mxu0 0.0
    %275 = vmatpush1.msra.mxu0 0.0
    %276 = vmatprep.subr.mxu0 0.0
    %277 = vmatpush1.msra.mxu0 0.0
    %278 = vmatprep.subr.mxu0 0.0
    %279 = vmatpush1.msra.mxu0 0.0
    %280 = vmatprep.subr.mxu0 0.0
    %281 = vmatpush1.msra.mxu0 0.0
    %282 = vmatprep.subr.mxu0 0.0
    %283 = vmatpush1.msra.mxu0 0.0
    %284 = vmatprep.subr.mxu0 0.0
    %285 = vmatpush1.msra.mxu0 0.0
    %286 = vmatprep.subr.mxu0 0.0
    %287 = vmatpush1.msra.mxu0 0.0
    %288 = vmatprep.subr.mxu0 0.0
    %289 = vmatpush1.msra.mxu0 0.0
    %290 = vmatprep.subr.mxu0 0.0
    %291 = vmatpush1.msra.mxu0 0.0
    %292 = vmatprep.subr.mxu0 0.0
    %293 = vmatpush1.msra.mxu0 0.0
    %294 = vmatprep.subr.mxu0 %v259
    %295 = vmatpush1.msra.mxu0 %v258
    %296 = vmatprep.subr.mxu0 %v257
    %297 = vmatpush1.msra.mxu0 %v256
    %298 = vmatprep.subr.mxu0 %v255
    %299 = vmatpush1.msra.mxu0 %v254
    %300 = vmatprep.subr.mxu0 %v253
    %301 = vmatpush1.msra.mxu0 %v252
    %302 = vmatprep.subr.mxu0 0.0
    %303 = vmatpush2.msra.mxu0 0.0
    %304 = vmatprep.subr.mxu0 0.0
    %305 = vmatpush2.msra.mxu0 0.0
    %306 = vmatprep.subr.mxu0 0.0
    %307 = vmatpush2.msra.mxu0 0.0
    %308 = vmatprep.subr.mxu0 0.0
    %309 = vmatpush2.msra.mxu0 0.0
    %310 = vmatprep.subr.mxu0 0.0
    %311 = vmatpush2.msra.mxu0 0.0
    %312 = vmatprep.subr.mxu0 0.0
    %313 = vmatpush2.msra.mxu0 0.0
    %314 = vmatprep.subr.mxu0 0.0
    %315 = vmatpush2.msra.mxu0 0.0
    %316 = vmatprep.subr.mxu0 0.0
    %317 = vmatpush2.msra.mxu0 0.0
    %318 = vmatprep.subr.mxu0 0.0
    %319 = vmatpush2.msra.mxu0 0.0
    %320 = vmatprep.subr.mxu0 0.0
    %321 = vmatpush2.msra.mxu0 0.0
    %322 = vmatprep.subr.mxu0 0.0
    %323 = vmatpush2.msra.mxu0 0.0
    %324 = vmatprep.subr.mxu0 0.0
    %325 = vmatpush2.msra.mxu0 0.0
    %326 = vmatprep.subr.mxu0 0.0
    %327 = vmatpush2.msra.mxu0 0.0
    %328 = vmatprep.subr.mxu0 0.0
    %329 = vmatpush2.msra.mxu0 0.0
    %330 = vmatprep.subr.mxu0 0.0
    %331 = vmatpush2.msra.mxu0 0.0
    %332 = vmatprep.subr.mxu0 0.0
    %333 = vmatpush2.msra.mxu0 0.0
    %334 = vmatprep.mubr.f32.mxu0 0.0
    %335 = vmatmul.mubr.f32.gmra.mxu0 %v265
    %v336 = vpop.f32.mrf.mxu0
    %v337 = vadd.f32 0.0, %v336
    %v338 = vpop.f32.mrf.mxu0
    %339 = vmatprep.mubr.f32.mxu0 0.0
    %340 = vmatmul.mubr.f32.gmra.mxu0 %v268
    %v341 = vpop.f32.mrf.mxu0
    %v342 = vpop.f32.mrf.mxu0
    %v343 = vadd.f32 0.0, %v342
    %344 = vdwg.mxu0
    %s345 = smul.u32 0, 2
    %s346 = smul.addr %s345, 8
    %s347 = scalar_lea.vmem [#allocation2], %s346
    %v348 = vld [vmem:[%s347] sm:$0xff]
    %s349 = smul.u32 7, 2
    %s350 = smul.addr %s349, 8
    %s351 = scalar_lea.vmem [#allocation2], %s350
    %v352 = vld [vmem:[%s351 + $0x8] sm:$0xff]
    %v353 = vadd.f32 %v348, %v337
    %v354 = vadd.f32 %v352, %v343
    %v355 = vmul.f32 %v353, 0.5
    %v356 = vmul.f32 %v354, 0.5
    %v357 = vtanh.pop %v355
    %v358 = vtanh.pop %v356
    %v359 = vadd.f32 %v357, 1.0
    %v360 = vadd.f32 %v358, 1.0
    %v361 = vmul.f32 %v359, 0.5
    %v362 = vmul.f32 %v360, 0.5
    %365 = vrot.lane.b32.xlu0 %v260, 64
    %v366 = vpop.permute.xlu0 %365
    %367 = vrot.lane.b32.xlu0 %v261, 64
    %v368 = vpop.permute.xlu0 %367
    %v371 = vadd.f32 %v337, %v366
    %v372 = vadd.f32 %v343, %v368
    %375 = vrot.lane.b32.xlu0 %v371, 64
    %v376 = vpop.permute.xlu0 %375
    %377 = vrot.lane.b32.xlu0 %v372, 64
    %v378 = vpop.permute.xlu0 %377
    %v381 = vmul.f32 %v361, %v376
    %v382 = vmul.f32 %v362, %v378
    %385 = vrot.lane.b32.xlu0 %v381, 64
    %v386 = vpop.permute.xlu0 %385
    %387 = vrot.lane.b32.xlu0 %v382, 64
    %v388 = vpop.permute.xlu0 %387
    %v391 = vadd.f32 %v348, %v386
    %v392 = vadd.f32 %v352, %v388
    %v393 = vtanh.pop %v391
    %v394 = vtanh.pop %v392
    %397 = vrot.lane.b32.xlu0 %v393, 64
    %v398 = vpop.permute.xlu0 %397
    %399 = vrot.lane.b32.xlu0 %v394, 64
    %v400 = vpop.permute.xlu0 %399
    %v403 = vsub.f32 %v262, %v398
    %v404 = vsub.f32 %v263, %v400
    %407 = vrot.lane.b32.xlu0 %v403, 32
    %v408 = vpop.permute.xlu0 %407
    %409 = vrot.lane.b32.xlu0 %v404, 32
    %v410 = vpop.permute.xlu0 %409
    %v413 = vmul.f32 %v361, %v408
    %v414 = vmul.f32 %v362, %v410
    %417 = vrot.lane.b32.xlu0 %v413, 32
    %v418 = vpop.permute.xlu0 %417
    %419 = vrot.lane.b32.xlu0 %v414, 32
    %v420 = vpop.permute.xlu0 %419
    %v423 = vadd.f32 %v393, %v418
    %v424 = vadd.f32 %v394, %v420
    %427 = vrot.lane.b32.xlu0 %v423, 64
    %v428 = vpop.permute.xlu0 %427
    %429 = vrot.lane.b32.xlu0 %v424, 64
    %v430 = vpop.permute.xlu0 %429
    %433 = vst.msk [vmem:[#allocation3] sm:$0xff] %vm249, %v428
    %434 = vst.msk [vmem:[#allocation3 + $0x8] sm:$0xff] %vm249, %v430
    %435 = vst.msk [vmem:[#allocation4] sm:$0xff] %vm249, %v428
    %s436 = scalar_lea.vmem [#allocation5], 56
    %437 = vst.msk [vmem:[%s436] sm:$0xff] %vm249, %v430
    %v438 = vld [vmem:[#allocation3] sm:$0xff]
    %v439 = vld [vmem:[#allocation3 + $0x8] sm:$0xff]
    %v441 = vsel %vm249, %v438, 0
    %v444 = vsel %vm249, %v439, 0
    %446 = vmatprep.subr.mxu0 0.0
    %447 = vmatpush1.msra.mxu0 0.0
    %448 = vmatprep.subr.mxu0 0.0
    %449 = vmatpush1.msra.mxu0 0.0
    %450 = vmatprep.subr.mxu0 0.0
    %451 = vmatpush1.msra.mxu0 0.0
    %452 = vmatprep.subr.mxu0 0.0
    %453 = vmatpush1.msra.mxu0 0.0
    %454 = vmatprep.subr.mxu0 0.0
    %455 = vmatpush1.msra.mxu0 0.0
    %456 = vmatprep.subr.mxu0 0.0
    %457 = vmatpush1.msra.mxu0 0.0
    %458 = vmatprep.subr.mxu0 0.0
    %459 = vmatpush1.msra.mxu0 0.0
    %460 = vmatprep.subr.mxu0 0.0
    %461 = vmatpush1.msra.mxu0 0.0
    %462 = vmatprep.subr.mxu0 0.0
    %463 = vmatpush1.msra.mxu0 0.0
    %464 = vmatprep.subr.mxu0 0.0
    %465 = vmatpush1.msra.mxu0 0.0
    %466 = vmatprep.subr.mxu0 0.0
    %467 = vmatpush1.msra.mxu0 0.0
    %468 = vmatprep.subr.mxu0 0.0
    %469 = vmatpush1.msra.mxu0 0.0
    %470 = vmatprep.subr.mxu0 %v259
    %471 = vmatpush1.msra.mxu0 %v258
    %472 = vmatprep.subr.mxu0 %v257
    %473 = vmatpush1.msra.mxu0 %v256
    %474 = vmatprep.subr.mxu0 %v255
    %475 = vmatpush1.msra.mxu0 %v254
    %476 = vmatprep.subr.mxu0 %v253
    %477 = vmatpush1.msra.mxu0 %v252
    %478 = vmatprep.subr.mxu0 0.0
    %479 = vmatpush2.msra.mxu0 0.0
    %480 = vmatprep.subr.mxu0 0.0
    %481 = vmatpush2.msra.mxu0 0.0
    %482 = vmatprep.subr.mxu0 0.0
    %483 = vmatpush2.msra.mxu0 0.0
    %484 = vmatprep.subr.mxu0 0.0
    %485 = vmatpush2.msra.mxu0 0.0
    %486 = vmatprep.subr.mxu0 0.0
    %487 = vmatpush2.msra.mxu0 0.0
    %488 = vmatprep.subr.mxu0 0.0
    %489 = vmatpush2.msra.mxu0 0.0
    %490 = vmatprep.subr.mxu0 0.0
    %491 = vmatpush2.msra.mxu0 0.0
    %492 = vmatprep.subr.mxu0 0.0
    %493 = vmatpush2.msra.mxu0 0.0
    %494 = vmatprep.subr.mxu0 0.0
    %495 = vmatpush2.msra.mxu0 0.0
    %496 = vmatprep.subr.mxu0 0.0
    %497 = vmatpush2.msra.mxu0 0.0
    %498 = vmatprep.subr.mxu0 0.0
    %499 = vmatpush2.msra.mxu0 0.0
    %500 = vmatprep.subr.mxu0 0.0
    %501 = vmatpush2.msra.mxu0 0.0
    %502 = vmatprep.subr.mxu0 0.0
    %503 = vmatpush2.msra.mxu0 0.0
    %504 = vmatprep.subr.mxu0 0.0
    %505 = vmatpush2.msra.mxu0 0.0
    %506 = vmatprep.subr.mxu0 0.0
    %507 = vmatpush2.msra.mxu0 0.0
    %508 = vmatprep.subr.mxu0 0.0
    %509 = vmatpush2.msra.mxu0 0.0
    %510 = vmatprep.mubr.f32.mxu0 0.0
    %511 = vmatmul.mubr.f32.gmra.mxu0 %v441
    %v512 = vpop.f32.mrf.mxu0
    %v513 = vadd.f32 0.0, %v512
    %v514 = vpop.f32.mrf.mxu0
    %515 = vmatprep.mubr.f32.mxu0 0.0
    %516 = vmatmul.mubr.f32.gmra.mxu0 %v444
    %v517 = vpop.f32.mrf.mxu0
    %v518 = vpop.f32.mrf.mxu0
    %v519 = vadd.f32 0.0, %v518
    %520 = vdwg.mxu0
    %s521 = smul.u32 1, 2
    %s522 = smul.addr %s521, 8
    %s523 = scalar_lea.vmem [#allocation2], %s522
    %v524 = vld [vmem:[%s523] sm:$0xff]
    %s525 = smul.u32 6, 2
    %s526 = smul.addr %s525, 8
    %s527 = scalar_lea.vmem [#allocation2], %s526
    %v528 = vld [vmem:[%s527 + $0x8] sm:$0xff]
    %v529 = vadd.f32 %v524, %v513
    %v530 = vadd.f32 %v528, %v519
    %v531 = vmul.f32 %v529, 0.5
    %v532 = vmul.f32 %v530, 0.5
    %v533 = vtanh.pop %v531
    %v534 = vtanh.pop %v532
    %v535 = vadd.f32 %v533, 1.0
    %v536 = vadd.f32 %v534, 1.0
    %v537 = vmul.f32 %v535, 0.5
    %v538 = vmul.f32 %v536, 0.5
    %v539 = vadd.f32 %v513, %v366
    %v540 = vadd.f32 %v519, %v368
    %543 = vrot.lane.b32.xlu0 %v539, 64
    %v544 = vpop.permute.xlu0 %543
    %545 = vrot.lane.b32.xlu0 %v540, 64
    %v546 = vpop.permute.xlu0 %545
    %v549 = vmul.f32 %v537, %v544
    %v550 = vmul.f32 %v538, %v546
    %553 = vrot.lane.b32.xlu0 %v549, 64
    %v554 = vpop.permute.xlu0 %553
    %555 = vrot.lane.b32.xlu0 %v550, 64
    %v556 = vpop.permute.xlu0 %555
    %v559 = vadd.f32 %v524, %v554
    %v560 = vadd.f32 %v528, %v556
    %v561 = vtanh.pop %v559
    %v562 = vtanh.pop %v560
    %565 = vrot.lane.b32.xlu0 %v561, 64
    %v566 = vpop.permute.xlu0 %565
    %567 = vrot.lane.b32.xlu0 %v562, 64
    %v568 = vpop.permute.xlu0 %567
    %v571 = vsub.f32 %v438, %v566
    %v572 = vsub.f32 %v439, %v568
    %575 = vrot.lane.b32.xlu0 %v571, 32
    %v576 = vpop.permute.xlu0 %575
    %577 = vrot.lane.b32.xlu0 %v572, 32
    %v578 = vpop.permute.xlu0 %577
    %v581 = vmul.f32 %v537, %v576
    %v582 = vmul.f32 %v538, %v578
    %585 = vrot.lane.b32.xlu0 %v581, 32
    %v586 = vpop.permute.xlu0 %585
    %587 = vrot.lane.b32.xlu0 %v582, 32
    %v588 = vpop.permute.xlu0 %587
    %v591 = vadd.f32 %v561, %v586
    %v592 = vadd.f32 %v562, %v588
    %595 = vrot.lane.b32.xlu0 %v591, 64
    %v596 = vpop.permute.xlu0 %595
    %597 = vrot.lane.b32.xlu0 %v592, 64
    %v598 = vpop.permute.xlu0 %597
    %601 = vst.msk [vmem:[#allocation3] sm:$0xff] %vm249, %v596
    %602 = vst.msk [vmem:[#allocation3 + $0x8] sm:$0xff] %vm249, %v598
    %s603 = scalar_lea.vmem [#allocation4], 8
    %604 = vst.msk [vmem:[%s603] sm:$0xff] %vm249, %v596
    %s605 = scalar_lea.vmem [#allocation5], 48
    %606 = vst.msk [vmem:[%s605] sm:$0xff] %vm249, %v598
    %v607 = vld [vmem:[#allocation3] sm:$0xff]
    %v608 = vld [vmem:[#allocation3 + $0x8] sm:$0xff]
    %v610 = vsel %vm249, %v607, 0
    %v613 = vsel %vm249, %v608, 0
    %615 = vmatprep.subr.mxu0 0.0
    %616 = vmatpush1.msra.mxu0 0.0
    %617 = vmatprep.subr.mxu0 0.0
    %618 = vmatpush1.msra.mxu0 0.0
    %619 = vmatprep.subr.mxu0 0.0
    %620 = vmatpush1.msra.mxu0 0.0
    %621 = vmatprep.subr.mxu0 0.0
    %622 = vmatpush1.msra.mxu0 0.0
    %623 = vmatprep.subr.mxu0 0.0
    %624 = vmatpush1.msra.mxu0 0.0
    %625 = vmatprep.subr.mxu0 0.0
    %626 = vmatpush1.msra.mxu0 0.0
    %627 = vmatprep.subr.mxu0 0.0
    %628 = vmatpush1.msra.mxu0 0.0
    %629 = vmatprep.subr.mxu0 0.0
    %630 = vmatpush1.msra.mxu0 0.0
    %631 = vmatprep.subr.mxu0 0.0
    %632 = vmatpush1.msra.mxu0 0.0
    %633 = vmatprep.subr.mxu0 0.0
    %634 = vmatpush1.msra.mxu0 0.0
    %635 = vmatprep.subr.mxu0 0.0
    %636 = vmatpush1.msra.mxu0 0.0
    %637 = vmatprep.subr.mxu0 0.0
    %638 = vmatpush1.msra.mxu0 0.0
    %639 = vmatprep.subr.mxu0 %v259
    %640 = vmatpush1.msra.mxu0 %v258
    %641 = vmatprep.subr.mxu0 %v257
    %642 = vmatpush1.msra.mxu0 %v256
    %643 = vmatprep.subr.mxu0 %v255
    %644 = vmatpush1.msra.mxu0 %v254
    %645 = vmatprep.subr.mxu0 %v253
    %646 = vmatpush1.msra.mxu0 %v252
    %647 = vmatprep.subr.mxu0 0.0
    %648 = vmatpush2.msra.mxu0 0.0
    %649 = vmatprep.subr.mxu0 0.0
    %650 = vmatpush2.msra.mxu0 0.0
    %651 = vmatprep.subr.mxu0 0.0
    %652 = vmatpush2.msra.mxu0 0.0
    %653 = vmatprep.subr.mxu0 0.0
    %654 = vmatpush2.msra.mxu0 0.0
    %655 = vmatprep.subr.mxu0 0.0
    %656 = vmatpush2.msra.mxu0 0.0
    %657 = vmatprep.subr.mxu0 0.0
    %658 = vmatpush2.msra.mxu0 0.0
    %659 = vmatprep.subr.mxu0 0.0
    %660 = vmatpush2.msra.mxu0 0.0
    %661 = vmatprep.subr.mxu0 0.0
    %662 = vmatpush2.msra.mxu0 0.0
    %663 = vmatprep.subr.mxu0 0.0
    %664 = vmatpush2.msra.mxu0 0.0
    %665 = vmatprep.subr.mxu0 0.0
    %666 = vmatpush2.msra.mxu0 0.0
    %667 = vmatprep.subr.mxu0 0.0
    %668 = vmatpush2.msra.mxu0 0.0
    %669 = vmatprep.subr.mxu0 0.0
    %670 = vmatpush2.msra.mxu0 0.0
    %671 = vmatprep.subr.mxu0 0.0
    %672 = vmatpush2.msra.mxu0 0.0
    %673 = vmatprep.subr.mxu0 0.0
    %674 = vmatpush2.msra.mxu0 0.0
    %675 = vmatprep.subr.mxu0 0.0
    %676 = vmatpush2.msra.mxu0 0.0
    %677 = vmatprep.subr.mxu0 0.0
    %678 = vmatpush2.msra.mxu0 0.0
    %679 = vmatprep.mubr.f32.mxu0 0.0
    %680 = vmatmul.mubr.f32.gmra.mxu0 %v610
    %v681 = vpop.f32.mrf.mxu0
    %v682 = vadd.f32 0.0, %v681
    %v683 = vpop.f32.mrf.mxu0
    %684 = vmatprep.mubr.f32.mxu0 0.0
    %685 = vmatmul.mubr.f32.gmra.mxu0 %v613
    %v686 = vpop.f32.mrf.mxu0
    %v687 = vpop.f32.mrf.mxu0
    %v688 = vadd.f32 0.0, %v687
    %689 = vdwg.mxu0
    %s690 = smul.u32 2, 2
    %s691 = smul.addr %s690, 8
    %s692 = scalar_lea.vmem [#allocation2], %s691
    %v693 = vld [vmem:[%s692] sm:$0xff]
    %s694 = smul.u32 5, 2
    %s695 = smul.addr %s694, 8
    %s696 = scalar_lea.vmem [#allocation2], %s695
    %v697 = vld [vmem:[%s696 + $0x8] sm:$0xff]
    %v698 = vadd.f32 %v693, %v682
    %v699 = vadd.f32 %v697, %v688
    %v700 = vmul.f32 %v698, 0.5
    %v701 = vmul.f32 %v699, 0.5
    %v702 = vtanh.pop %v700
    %v703 = vtanh.pop %v701
    %v704 = vadd.f32 %v702, 1.0
    %v705 = vadd.f32 %v703, 1.0
    %v706 = vmul.f32 %v704, 0.5
    %v707 = vmul.f32 %v705, 0.5
    %v708 = vadd.f32 %v682, %v366
    %v709 = vadd.f32 %v688, %v368
    %712 = vrot.lane.b32.xlu0 %v708, 64
    %v713 = vpop.permute.xlu0 %712
    %714 = vrot.lane.b32.xlu0 %v709, 64
    %v715 = vpop.permute.xlu0 %714
    %v718 = vmul.f32 %v706, %v713
    %v719 = vmul.f32 %v707, %v715
    %722 = vrot.lane.b32.xlu0 %v718, 64
    %v723 = vpop.permute.xlu0 %722
    %724 = vrot.lane.b32.xlu0 %v719, 64
    %v725 = vpop.permute.xlu0 %724
    %v728 = vadd.f32 %v693, %v723
    %v729 = vadd.f32 %v697, %v725
    %v730 = vtanh.pop %v728
    %v731 = vtanh.pop %v729
    %734 = vrot.lane.b32.xlu0 %v730, 64
    %v735 = vpop.permute.xlu0 %734
    %736 = vrot.lane.b32.xlu0 %v731, 64
    %v737 = vpop.permute.xlu0 %736
    %v740 = vsub.f32 %v607, %v735
    %v741 = vsub.f32 %v608, %v737
    %744 = vrot.lane.b32.xlu0 %v740, 32
    %v745 = vpop.permute.xlu0 %744
    %746 = vrot.lane.b32.xlu0 %v741, 32
    %v747 = vpop.permute.xlu0 %746
    %v750 = vmul.f32 %v706, %v745
    %v751 = vmul.f32 %v707, %v747
    %754 = vrot.lane.b32.xlu0 %v750, 32
    %v755 = vpop.permute.xlu0 %754
    %756 = vrot.lane.b32.xlu0 %v751, 32
    %v757 = vpop.permute.xlu0 %756
    %v760 = vadd.f32 %v730, %v755
    %v761 = vadd.f32 %v731, %v757
    %764 = vrot.lane.b32.xlu0 %v760, 64
    %v765 = vpop.permute.xlu0 %764
    %766 = vrot.lane.b32.xlu0 %v761, 64
    %v767 = vpop.permute.xlu0 %766
    %770 = vst.msk [vmem:[#allocation3] sm:$0xff] %vm249, %v765
    %771 = vst.msk [vmem:[#allocation3 + $0x8] sm:$0xff] %vm249, %v767
    %s772 = scalar_lea.vmem [#allocation4], 16
    %773 = vst.msk [vmem:[%s772] sm:$0xff] %vm249, %v765
    %s774 = scalar_lea.vmem [#allocation5], 40
    %775 = vst.msk [vmem:[%s774] sm:$0xff] %vm249, %v767
    %v776 = vld [vmem:[#allocation3] sm:$0xff]
    %v777 = vld [vmem:[#allocation3 + $0x8] sm:$0xff]
    %v779 = vsel %vm249, %v776, 0
    %v782 = vsel %vm249, %v777, 0
    %784 = vmatprep.subr.mxu0 0.0
    %785 = vmatpush1.msra.mxu0 0.0
    %786 = vmatprep.subr.mxu0 0.0
    %787 = vmatpush1.msra.mxu0 0.0
    %788 = vmatprep.subr.mxu0 0.0
    %789 = vmatpush1.msra.mxu0 0.0
    %790 = vmatprep.subr.mxu0 0.0
    %791 = vmatpush1.msra.mxu0 0.0
    %792 = vmatprep.subr.mxu0 0.0
    %793 = vmatpush1.msra.mxu0 0.0
    %794 = vmatprep.subr.mxu0 0.0
    %795 = vmatpush1.msra.mxu0 0.0
    %796 = vmatprep.subr.mxu0 0.0
    %797 = vmatpush1.msra.mxu0 0.0
    %798 = vmatprep.subr.mxu0 0.0
    %799 = vmatpush1.msra.mxu0 0.0
    %800 = vmatprep.subr.mxu0 0.0
    %801 = vmatpush1.msra.mxu0 0.0
    %802 = vmatprep.subr.mxu0 0.0
    %803 = vmatpush1.msra.mxu0 0.0
    %804 = vmatprep.subr.mxu0 0.0
    %805 = vmatpush1.msra.mxu0 0.0
    %806 = vmatprep.subr.mxu0 0.0
    %807 = vmatpush1.msra.mxu0 0.0
    %808 = vmatprep.subr.mxu0 %v259
    %809 = vmatpush1.msra.mxu0 %v258
    %810 = vmatprep.subr.mxu0 %v257
    %811 = vmatpush1.msra.mxu0 %v256
    %812 = vmatprep.subr.mxu0 %v255
    %813 = vmatpush1.msra.mxu0 %v254
    %814 = vmatprep.subr.mxu0 %v253
    %815 = vmatpush1.msra.mxu0 %v252
    %816 = vmatprep.subr.mxu0 0.0
    %817 = vmatpush2.msra.mxu0 0.0
    %818 = vmatprep.subr.mxu0 0.0
    %819 = vmatpush2.msra.mxu0 0.0
    %820 = vmatprep.subr.mxu0 0.0
    %821 = vmatpush2.msra.mxu0 0.0
    %822 = vmatprep.subr.mxu0 0.0
    %823 = vmatpush2.msra.mxu0 0.0
    %824 = vmatprep.subr.mxu0 0.0
    %825 = vmatpush2.msra.mxu0 0.0
    %826 = vmatprep.subr.mxu0 0.0
    %827 = vmatpush2.msra.mxu0 0.0
    %828 = vmatprep.subr.mxu0 0.0
    %829 = vmatpush2.msra.mxu0 0.0
    %830 = vmatprep.subr.mxu0 0.0
    %831 = vmatpush2.msra.mxu0 0.0
    %832 = vmatprep.subr.mxu0 0.0
    %833 = vmatpush2.msra.mxu0 0.0
    %834 = vmatprep.subr.mxu0 0.0
    %835 = vmatpush2.msra.mxu0 0.0
    %836 = vmatprep.subr.mxu0 0.0
    %837 = vmatpush2.msra.mxu0 0.0
    %838 = vmatprep.subr.mxu0 0.0
    %839 = vmatpush2.msra.mxu0 0.0
    %840 = vmatprep.subr.mxu0 0.0
    %841 = vmatpush2.msra.mxu0 0.0
    %842 = vmatprep.subr.mxu0 0.0
    %843 = vmatpush2.msra.mxu0 0.0
    %844 = vmatprep.subr.mxu0 0.0
    %845 = vmatpush2.msra.mxu0 0.0
    %846 = vmatprep.subr.mxu0 0.0
    %847 = vmatpush2.msra.mxu0 0.0
    %848 = vmatprep.mubr.f32.mxu0 0.0
    %849 = vmatmul.mubr.f32.gmra.mxu0 %v779
    %v850 = vpop.f32.mrf.mxu0
    %v851 = vadd.f32 0.0, %v850
    %v852 = vpop.f32.mrf.mxu0
    %853 = vmatprep.mubr.f32.mxu0 0.0
    %854 = vmatmul.mubr.f32.gmra.mxu0 %v782
    %v855 = vpop.f32.mrf.mxu0
    %v856 = vpop.f32.mrf.mxu0
    %v857 = vadd.f32 0.0, %v856
    %858 = vdwg.mxu0
    %s859 = smul.u32 3, 2
    %s860 = smul.addr %s859, 8
    %s861 = scalar_lea.vmem [#allocation2], %s860
    %v862 = vld [vmem:[%s861] sm:$0xff]
    %s863 = smul.u32 4, 2
    %s864 = smul.addr %s863, 8
    %s865 = scalar_lea.vmem [#allocation2], %s864
    %v866 = vld [vmem:[%s865 + $0x8] sm:$0xff]
    %v867 = vadd.f32 %v862, %v851
    %v868 = vadd.f32 %v866, %v857
    %v869 = vmul.f32 %v867, 0.5
    %v870 = vmul.f32 %v868, 0.5
    %v871 = vtanh.pop %v869
    %v872 = vtanh.pop %v870
    %v873 = vadd.f32 %v871, 1.0
    %v874 = vadd.f32 %v872, 1.0
    %v875 = vmul.f32 %v873, 0.5
    %v876 = vmul.f32 %v874, 0.5
    %v877 = vadd.f32 %v851, %v366
    %v878 = vadd.f32 %v857, %v368
    %881 = vrot.lane.b32.xlu0 %v877, 64
    %v882 = vpop.permute.xlu0 %881
    %883 = vrot.lane.b32.xlu0 %v878, 64
    %v884 = vpop.permute.xlu0 %883
    %v887 = vmul.f32 %v875, %v882
    %v888 = vmul.f32 %v876, %v884
    %891 = vrot.lane.b32.xlu0 %v887, 64
    %v892 = vpop.permute.xlu0 %891
    %893 = vrot.lane.b32.xlu0 %v888, 64
    %v894 = vpop.permute.xlu0 %893
    %v897 = vadd.f32 %v862, %v892
    %v898 = vadd.f32 %v866, %v894
    %v899 = vtanh.pop %v897
    %v900 = vtanh.pop %v898
    %903 = vrot.lane.b32.xlu0 %v899, 64
    %v904 = vpop.permute.xlu0 %903
    %905 = vrot.lane.b32.xlu0 %v900, 64
    %v906 = vpop.permute.xlu0 %905
    %v909 = vsub.f32 %v776, %v904
    %v910 = vsub.f32 %v777, %v906
    %913 = vrot.lane.b32.xlu0 %v909, 32
    %v914 = vpop.permute.xlu0 %913
    %915 = vrot.lane.b32.xlu0 %v910, 32
    %v916 = vpop.permute.xlu0 %915
    %v919 = vmul.f32 %v875, %v914
    %v920 = vmul.f32 %v876, %v916
    %923 = vrot.lane.b32.xlu0 %v919, 32
    %v924 = vpop.permute.xlu0 %923
    %925 = vrot.lane.b32.xlu0 %v920, 32
    %v926 = vpop.permute.xlu0 %925
    %v929 = vadd.f32 %v899, %v924
    %v930 = vadd.f32 %v900, %v926
    %933 = vrot.lane.b32.xlu0 %v929, 64
    %v934 = vpop.permute.xlu0 %933
    %935 = vrot.lane.b32.xlu0 %v930, 64
    %v936 = vpop.permute.xlu0 %935
    %939 = vst.msk [vmem:[#allocation3] sm:$0xff] %vm249, %v934
    %940 = vst.msk [vmem:[#allocation3 + $0x8] sm:$0xff] %vm249, %v936
    %s941 = scalar_lea.vmem [#allocation4], 24
    %942 = vst.msk [vmem:[%s941] sm:$0xff] %vm249, %v934
    %s943 = scalar_lea.vmem [#allocation5], 32
    %944 = vst.msk [vmem:[%s943] sm:$0xff] %vm249, %v936
    %v945 = vld [vmem:[#allocation3] sm:$0xff]
    %v946 = vld [vmem:[#allocation3 + $0x8] sm:$0xff]
    %v948 = vsel %vm249, %v945, 0
    %v951 = vsel %vm249, %v946, 0
    %953 = vmatprep.subr.mxu0 0.0
    %954 = vmatpush1.msra.mxu0 0.0
    %955 = vmatprep.subr.mxu0 0.0
    %956 = vmatpush1.msra.mxu0 0.0
    %957 = vmatprep.subr.mxu0 0.0
    %958 = vmatpush1.msra.mxu0 0.0
    %959 = vmatprep.subr.mxu0 0.0
    %960 = vmatpush1.msra.mxu0 0.0
    %961 = vmatprep.subr.mxu0 0.0
    %962 = vmatpush1.msra.mxu0 0.0
    %963 = vmatprep.subr.mxu0 0.0
    %964 = vmatpush1.msra.mxu0 0.0
    %965 = vmatprep.subr.mxu0 0.0
    %966 = vmatpush1.msra.mxu0 0.0
    %967 = vmatprep.subr.mxu0 0.0
    %968 = vmatpush1.msra.mxu0 0.0
    %969 = vmatprep.subr.mxu0 0.0
    %970 = vmatpush1.msra.mxu0 0.0
    %971 = vmatprep.subr.mxu0 0.0
    %972 = vmatpush1.msra.mxu0 0.0
    %973 = vmatprep.subr.mxu0 0.0
    %974 = vmatpush1.msra.mxu0 0.0
    %975 = vmatprep.subr.mxu0 0.0
    %976 = vmatpush1.msra.mxu0 0.0
    %977 = vmatprep.subr.mxu0 %v259
    %978 = vmatpush1.msra.mxu0 %v258
    %979 = vmatprep.subr.mxu0 %v257
    %980 = vmatpush1.msra.mxu0 %v256
    %981 = vmatprep.subr.mxu0 %v255
    %982 = vmatpush1.msra.mxu0 %v254
    %983 = vmatprep.subr.mxu0 %v253
    %984 = vmatpush1.msra.mxu0 %v252
    %985 = vmatprep.subr.mxu0 0.0
    %986 = vmatpush2.msra.mxu0 0.0
    %987 = vmatprep.subr.mxu0 0.0
    %988 = vmatpush2.msra.mxu0 0.0
    %989 = vmatprep.subr.mxu0 0.0
    %990 = vmatpush2.msra.mxu0 0.0
    %991 = vmatprep.subr.mxu0 0.0
    %992 = vmatpush2.msra.mxu0 0.0
    %993 = vmatprep.subr.mxu0 0.0
    %994 = vmatpush2.msra.mxu0 0.0
    %995 = vmatprep.subr.mxu0 0.0
    %996 = vmatpush2.msra.mxu0 0.0
    %997 = vmatprep.subr.mxu0 0.0
    %998 = vmatpush2.msra.mxu0 0.0
    %999 = vmatprep.subr.mxu0 0.0
    %1000 = vmatpush2.msra.mxu0 0.0
    %1001 = vmatprep.subr.mxu0 0.0
    %1002 = vmatpush2.msra.mxu0 0.0
    %1003 = vmatprep.subr.mxu0 0.0
    %1004 = vmatpush2.msra.mxu0 0.0
    %1005 = vmatprep.subr.mxu0 0.0
    %1006 = vmatpush2.msra.mxu0 0.0
    %1007 = vmatprep.subr.mxu0 0.0
    %1008 = vmatpush2.msra.mxu0 0.0
    %1009 = vmatprep.subr.mxu0 0.0
    %1010 = vmatpush2.msra.mxu0 0.0
    %1011 = vmatprep.subr.mxu0 0.0
    %1012 = vmatpush2.msra.mxu0 0.0
    %1013 = vmatprep.subr.mxu0 0.0
    %1014 = vmatpush2.msra.mxu0 0.0
    %1015 = vmatprep.subr.mxu0 0.0
    %1016 = vmatpush2.msra.mxu0 0.0
    %1017 = vmatprep.mubr.f32.mxu0 0.0
    %1018 = vmatmul.mubr.f32.gmra.mxu0 %v948
    %v1019 = vpop.f32.mrf.mxu0
    %v1020 = vadd.f32 0.0, %v1019
    %v1021 = vpop.f32.mrf.mxu0
    %1022 = vmatprep.mubr.f32.mxu0 0.0
    %1023 = vmatmul.mubr.f32.gmra.mxu0 %v951
    %v1024 = vpop.f32.mrf.mxu0
    %v1025 = vpop.f32.mrf.mxu0
    %v1026 = vadd.f32 0.0, %v1025
    %1027 = vdwg.mxu0
    %v1028 = vld [vmem:[%s865] sm:$0xff]
    %v1029 = vld [vmem:[%s861 + $0x8] sm:$0xff]
    %v1030 = vadd.f32 %v1028, %v1020
    %v1031 = vadd.f32 %v1029, %v1026
    %v1032 = vmul.f32 %v1030, 0.5
    %v1033 = vmul.f32 %v1031, 0.5
    %v1034 = vtanh.pop %v1032
    %v1035 = vtanh.pop %v1033
    %v1036 = vadd.f32 %v1034, 1.0
    %v1037 = vadd.f32 %v1035, 1.0
    %v1038 = vmul.f32 %v1036, 0.5
    %v1039 = vmul.f32 %v1037, 0.5
    %v1040 = vadd.f32 %v1020, %v366
    %v1041 = vadd.f32 %v1026, %v368
    %1044 = vrot.lane.b32.xlu0 %v1040, 64
    %v1045 = vpop.permute.xlu0 %1044
    %1046 = vrot.lane.b32.xlu0 %v1041, 64
    %v1047 = vpop.permute.xlu0 %1046
    %v1050 = vmul.f32 %v1038, %v1045
    %v1051 = vmul.f32 %v1039, %v1047
    %1054 = vrot.lane.b32.xlu0 %v1050, 64
    %v1055 = vpop.permute.xlu0 %1054
    %1056 = vrot.lane.b32.xlu0 %v1051, 64
    %v1057 = vpop.permute.xlu0 %1056
    %v1060 = vadd.f32 %v1028, %v1055
    %v1061 = vadd.f32 %v1029, %v1057
    %v1062 = vtanh.pop %v1060
    %v1063 = vtanh.pop %v1061
    %1066 = vrot.lane.b32.xlu0 %v1062, 64
    %v1067 = vpop.permute.xlu0 %1066
    %1068 = vrot.lane.b32.xlu0 %v1063, 64
    %v1069 = vpop.permute.xlu0 %1068
    %v1072 = vsub.f32 %v945, %v1067
    %v1073 = vsub.f32 %v946, %v1069
    %1076 = vrot.lane.b32.xlu0 %v1072, 32
    %v1077 = vpop.permute.xlu0 %1076
    %1078 = vrot.lane.b32.xlu0 %v1073, 32
    %v1079 = vpop.permute.xlu0 %1078
    %v1082 = vmul.f32 %v1038, %v1077
    %v1083 = vmul.f32 %v1039, %v1079
    %1086 = vrot.lane.b32.xlu0 %v1082, 32
    %v1087 = vpop.permute.xlu0 %1086
    %1088 = vrot.lane.b32.xlu0 %v1083, 32
    %v1089 = vpop.permute.xlu0 %1088
    %v1092 = vadd.f32 %v1062, %v1087
    %v1093 = vadd.f32 %v1063, %v1089
    %1096 = vrot.lane.b32.xlu0 %v1092, 64
    %v1097 = vpop.permute.xlu0 %1096
    %1098 = vrot.lane.b32.xlu0 %v1093, 64
    %v1099 = vpop.permute.xlu0 %1098
    %1102 = vst.msk [vmem:[#allocation3] sm:$0xff] %vm249, %v1097
    %1103 = vst.msk [vmem:[#allocation3 + $0x8] sm:$0xff] %vm249, %v1099
    %s1104 = scalar_lea.vmem [#allocation4], 32
    %1105 = vst.msk [vmem:[%s1104] sm:$0xff] %vm249, %v1097
    %s1106 = scalar_lea.vmem [#allocation5], 24
    %1107 = vst.msk [vmem:[%s1106] sm:$0xff] %vm249, %v1099
    %v1108 = vld [vmem:[#allocation3] sm:$0xff]
    %v1109 = vld [vmem:[#allocation3 + $0x8] sm:$0xff]
    %v1111 = vsel %vm249, %v1108, 0
    %v1114 = vsel %vm249, %v1109, 0
    %1116 = vmatprep.subr.mxu0 0.0
    %1117 = vmatpush1.msra.mxu0 0.0
    %1118 = vmatprep.subr.mxu0 0.0
    %1119 = vmatpush1.msra.mxu0 0.0
    %1120 = vmatprep.subr.mxu0 0.0
    %1121 = vmatpush1.msra.mxu0 0.0
    %1122 = vmatprep.subr.mxu0 0.0
    %1123 = vmatpush1.msra.mxu0 0.0
    %1124 = vmatprep.subr.mxu0 0.0
    %1125 = vmatpush1.msra.mxu0 0.0
    %1126 = vmatprep.subr.mxu0 0.0
    %1127 = vmatpush1.msra.mxu0 0.0
    %1128 = vmatprep.subr.mxu0 0.0
    %1129 = vmatpush1.msra.mxu0 0.0
    %1130 = vmatprep.subr.mxu0 0.0
    %1131 = vmatpush1.msra.mxu0 0.0
    %1132 = vmatprep.subr.mxu0 0.0
    %1133 = vmatpush1.msra.mxu0 0.0
    %1134 = vmatprep.subr.mxu0 0.0
    %1135 = vmatpush1.msra.mxu0 0.0
    %1136 = vmatprep.subr.mxu0 0.0
    %1137 = vmatpush1.msra.mxu0 0.0
    %1138 = vmatprep.subr.mxu0 0.0
    %1139 = vmatpush1.msra.mxu0 0.0
    %1140 = vmatprep.subr.mxu0 %v259
    %1141 = vmatpush1.msra.mxu0 %v258
    %1142 = vmatprep.subr.mxu0 %v257
    %1143 = vmatpush1.msra.mxu0 %v256
    %1144 = vmatprep.subr.mxu0 %v255
    %1145 = vmatpush1.msra.mxu0 %v254
    %1146 = vmatprep.subr.mxu0 %v253
    %1147 = vmatpush1.msra.mxu0 %v252
    %1148 = vmatprep.subr.mxu0 0.0
    %1149 = vmatpush2.msra.mxu0 0.0
    %1150 = vmatprep.subr.mxu0 0.0
    %1151 = vmatpush2.msra.mxu0 0.0
    %1152 = vmatprep.subr.mxu0 0.0
    %1153 = vmatpush2.msra.mxu0 0.0
    %1154 = vmatprep.subr.mxu0 0.0
    %1155 = vmatpush2.msra.mxu0 0.0
    %1156 = vmatprep.subr.mxu0 0.0
    %1157 = vmatpush2.msra.mxu0 0.0
    %1158 = vmatprep.subr.mxu0 0.0
    %1159 = vmatpush2.msra.mxu0 0.0
    %1160 = vmatprep.subr.mxu0 0.0
    %1161 = vmatpush2.msra.mxu0 0.0
    %1162 = vmatprep.subr.mxu0 0.0
    %1163 = vmatpush2.msra.mxu0 0.0
    %1164 = vmatprep.subr.mxu0 0.0
    %1165 = vmatpush2.msra.mxu0 0.0
    %1166 = vmatprep.subr.mxu0 0.0
    %1167 = vmatpush2.msra.mxu0 0.0
    %1168 = vmatprep.subr.mxu0 0.0
    %1169 = vmatpush2.msra.mxu0 0.0
    %1170 = vmatprep.subr.mxu0 0.0
    %1171 = vmatpush2.msra.mxu0 0.0
    %1172 = vmatprep.subr.mxu0 0.0
    %1173 = vmatpush2.msra.mxu0 0.0
    %1174 = vmatprep.subr.mxu0 0.0
    %1175 = vmatpush2.msra.mxu0 0.0
    %1176 = vmatprep.subr.mxu0 0.0
    %1177 = vmatpush2.msra.mxu0 0.0
    %1178 = vmatprep.subr.mxu0 0.0
    %1179 = vmatpush2.msra.mxu0 0.0
    %1180 = vmatprep.mubr.f32.mxu0 0.0
    %1181 = vmatmul.mubr.f32.gmra.mxu0 %v1111
    %v1182 = vpop.f32.mrf.mxu0
    %v1183 = vadd.f32 0.0, %v1182
    %v1184 = vpop.f32.mrf.mxu0
    %1185 = vmatprep.mubr.f32.mxu0 0.0
    %1186 = vmatmul.mubr.f32.gmra.mxu0 %v1114
    %v1187 = vpop.f32.mrf.mxu0
    %v1188 = vpop.f32.mrf.mxu0
    %v1189 = vadd.f32 0.0, %v1188
    %1190 = vdwg.mxu0
    %v1191 = vld [vmem:[%s696] sm:$0xff]
    %v1192 = vld [vmem:[%s692 + $0x8] sm:$0xff]
    %v1193 = vadd.f32 %v1191, %v1183
    %v1194 = vadd.f32 %v1192, %v1189
    %v1195 = vmul.f32 %v1193, 0.5
    %v1196 = vmul.f32 %v1194, 0.5
    %v1197 = vtanh.pop %v1195
    %v1198 = vtanh.pop %v1196
    %v1199 = vadd.f32 %v1197, 1.0
    %v1200 = vadd.f32 %v1198, 1.0
    %v1201 = vmul.f32 %v1199, 0.5
    %v1202 = vmul.f32 %v1200, 0.5
    %v1203 = vadd.f32 %v1183, %v366
    %v1204 = vadd.f32 %v1189, %v368
    %1207 = vrot.lane.b32.xlu0 %v1203, 64
    %v1208 = vpop.permute.xlu0 %1207
    %1209 = vrot.lane.b32.xlu0 %v1204, 64
    %v1210 = vpop.permute.xlu0 %1209
    %v1213 = vmul.f32 %v1201, %v1208
    %v1214 = vmul.f32 %v1202, %v1210
    %1217 = vrot.lane.b32.xlu0 %v1213, 64
    %v1218 = vpop.permute.xlu0 %1217
    %1219 = vrot.lane.b32.xlu0 %v1214, 64
    %v1220 = vpop.permute.xlu0 %1219
    %v1223 = vadd.f32 %v1191, %v1218
    %v1224 = vadd.f32 %v1192, %v1220
    %v1225 = vtanh.pop %v1223
    %v1226 = vtanh.pop %v1224
    %1229 = vrot.lane.b32.xlu0 %v1225, 64
    %v1230 = vpop.permute.xlu0 %1229
    %1231 = vrot.lane.b32.xlu0 %v1226, 64
    %v1232 = vpop.permute.xlu0 %1231
    %v1235 = vsub.f32 %v1108, %v1230
    %v1236 = vsub.f32 %v1109, %v1232
    %1239 = vrot.lane.b32.xlu0 %v1235, 32
    %v1240 = vpop.permute.xlu0 %1239
    %1241 = vrot.lane.b32.xlu0 %v1236, 32
    %v1242 = vpop.permute.xlu0 %1241
    %v1245 = vmul.f32 %v1201, %v1240
    %v1246 = vmul.f32 %v1202, %v1242
    %1249 = vrot.lane.b32.xlu0 %v1245, 32
    %v1250 = vpop.permute.xlu0 %1249
    %1251 = vrot.lane.b32.xlu0 %v1246, 32
    %v1252 = vpop.permute.xlu0 %1251
    %v1255 = vadd.f32 %v1225, %v1250
    %v1256 = vadd.f32 %v1226, %v1252
    %1259 = vrot.lane.b32.xlu0 %v1255, 64
    %v1260 = vpop.permute.xlu0 %1259
    %1261 = vrot.lane.b32.xlu0 %v1256, 64
    %v1262 = vpop.permute.xlu0 %1261
    %1265 = vst.msk [vmem:[#allocation3] sm:$0xff] %vm249, %v1260
    %1266 = vst.msk [vmem:[#allocation3 + $0x8] sm:$0xff] %vm249, %v1262
    %s1267 = scalar_lea.vmem [#allocation4], 40
    %1268 = vst.msk [vmem:[%s1267] sm:$0xff] %vm249, %v1260
    %s1269 = scalar_lea.vmem [#allocation5], 16
    %1270 = vst.msk [vmem:[%s1269] sm:$0xff] %vm249, %v1262
    %v1271 = vld [vmem:[#allocation3] sm:$0xff]
    %v1272 = vld [vmem:[#allocation3 + $0x8] sm:$0xff]
    %v1274 = vsel %vm249, %v1271, 0
    %v1277 = vsel %vm249, %v1272, 0
    %1279 = vmatprep.subr.mxu0 0.0
    %1280 = vmatpush1.msra.mxu0 0.0
    %1281 = vmatprep.subr.mxu0 0.0
    %1282 = vmatpush1.msra.mxu0 0.0
    %1283 = vmatprep.subr.mxu0 0.0
    %1284 = vmatpush1.msra.mxu0 0.0
    %1285 = vmatprep.subr.mxu0 0.0
    %1286 = vmatpush1.msra.mxu0 0.0
    %1287 = vmatprep.subr.mxu0 0.0
    %1288 = vmatpush1.msra.mxu0 0.0
    %1289 = vmatprep.subr.mxu0 0.0
    %1290 = vmatpush1.msra.mxu0 0.0
    %1291 = vmatprep.subr.mxu0 0.0
    %1292 = vmatpush1.msra.mxu0 0.0
    %1293 = vmatprep.subr.mxu0 0.0
    %1294 = vmatpush1.msra.mxu0 0.0
    %1295 = vmatprep.subr.mxu0 0.0
    %1296 = vmatpush1.msra.mxu0 0.0
    %1297 = vmatprep.subr.mxu0 0.0
    %1298 = vmatpush1.msra.mxu0 0.0
    %1299 = vmatprep.subr.mxu0 0.0
    %1300 = vmatpush1.msra.mxu0 0.0
    %1301 = vmatprep.subr.mxu0 0.0
    %1302 = vmatpush1.msra.mxu0 0.0
    %1303 = vmatprep.subr.mxu0 %v259
    %1304 = vmatpush1.msra.mxu0 %v258
    %1305 = vmatprep.subr.mxu0 %v257
    %1306 = vmatpush1.msra.mxu0 %v256
    %1307 = vmatprep.subr.mxu0 %v255
    %1308 = vmatpush1.msra.mxu0 %v254
    %1309 = vmatprep.subr.mxu0 %v253
    %1310 = vmatpush1.msra.mxu0 %v252
    %1311 = vmatprep.subr.mxu0 0.0
    %1312 = vmatpush2.msra.mxu0 0.0
    %1313 = vmatprep.subr.mxu0 0.0
    %1314 = vmatpush2.msra.mxu0 0.0
    %1315 = vmatprep.subr.mxu0 0.0
    %1316 = vmatpush2.msra.mxu0 0.0
    %1317 = vmatprep.subr.mxu0 0.0
    %1318 = vmatpush2.msra.mxu0 0.0
    %1319 = vmatprep.subr.mxu0 0.0
    %1320 = vmatpush2.msra.mxu0 0.0
    %1321 = vmatprep.subr.mxu0 0.0
    %1322 = vmatpush2.msra.mxu0 0.0
    %1323 = vmatprep.subr.mxu0 0.0
    %1324 = vmatpush2.msra.mxu0 0.0
    %1325 = vmatprep.subr.mxu0 0.0
    %1326 = vmatpush2.msra.mxu0 0.0
    %1327 = vmatprep.subr.mxu0 0.0
    %1328 = vmatpush2.msra.mxu0 0.0
    %1329 = vmatprep.subr.mxu0 0.0
    %1330 = vmatpush2.msra.mxu0 0.0
    %1331 = vmatprep.subr.mxu0 0.0
    %1332 = vmatpush2.msra.mxu0 0.0
    %1333 = vmatprep.subr.mxu0 0.0
    %1334 = vmatpush2.msra.mxu0 0.0
    %1335 = vmatprep.subr.mxu0 0.0
    %1336 = vmatpush2.msra.mxu0 0.0
    %1337 = vmatprep.subr.mxu0 0.0
    %1338 = vmatpush2.msra.mxu0 0.0
    %1339 = vmatprep.subr.mxu0 0.0
    %1340 = vmatpush2.msra.mxu0 0.0
    %1341 = vmatprep.subr.mxu0 0.0
    %1342 = vmatpush2.msra.mxu0 0.0
    %1343 = vmatprep.mubr.f32.mxu0 0.0
    %1344 = vmatmul.mubr.f32.gmra.mxu0 %v1274
    %v1345 = vpop.f32.mrf.mxu0
    %v1346 = vadd.f32 0.0, %v1345
    %v1347 = vpop.f32.mrf.mxu0
    %1348 = vmatprep.mubr.f32.mxu0 0.0
    %1349 = vmatmul.mubr.f32.gmra.mxu0 %v1277
    %v1350 = vpop.f32.mrf.mxu0
    %v1351 = vpop.f32.mrf.mxu0
    %v1352 = vadd.f32 0.0, %v1351
    %1353 = vdwg.mxu0
    %v1354 = vld [vmem:[%s527] sm:$0xff]
    %v1355 = vld [vmem:[%s523 + $0x8] sm:$0xff]
    %v1356 = vadd.f32 %v1354, %v1346
    %v1357 = vadd.f32 %v1355, %v1352
    %v1358 = vmul.f32 %v1356, 0.5
    %v1359 = vmul.f32 %v1357, 0.5
    %v1360 = vtanh.pop %v1358
    %v1361 = vtanh.pop %v1359
    %v1362 = vadd.f32 %v1360, 1.0
    %v1363 = vadd.f32 %v1361, 1.0
    %v1364 = vmul.f32 %v1362, 0.5
    %v1365 = vmul.f32 %v1363, 0.5
    %v1366 = vadd.f32 %v1346, %v366
    %v1367 = vadd.f32 %v1352, %v368
    %1370 = vrot.lane.b32.xlu0 %v1366, 64
    %v1371 = vpop.permute.xlu0 %1370
    %1372 = vrot.lane.b32.xlu0 %v1367, 64
    %v1373 = vpop.permute.xlu0 %1372
    %v1376 = vmul.f32 %v1364, %v1371
    %v1377 = vmul.f32 %v1365, %v1373
    %1380 = vrot.lane.b32.xlu0 %v1376, 64
    %v1381 = vpop.permute.xlu0 %1380
    %1382 = vrot.lane.b32.xlu0 %v1377, 64
    %v1383 = vpop.permute.xlu0 %1382
    %v1386 = vadd.f32 %v1354, %v1381
    %v1387 = vadd.f32 %v1355, %v1383
    %v1388 = vtanh.pop %v1386
    %v1389 = vtanh.pop %v1387
    %1392 = vrot.lane.b32.xlu0 %v1388, 64
    %v1393 = vpop.permute.xlu0 %1392
    %1394 = vrot.lane.b32.xlu0 %v1389, 64
    %v1395 = vpop.permute.xlu0 %1394
    %v1398 = vsub.f32 %v1271, %v1393
    %v1399 = vsub.f32 %v1272, %v1395
    %1402 = vrot.lane.b32.xlu0 %v1398, 32
    %v1403 = vpop.permute.xlu0 %1402
    %1404 = vrot.lane.b32.xlu0 %v1399, 32
    %v1405 = vpop.permute.xlu0 %1404
    %v1408 = vmul.f32 %v1364, %v1403
    %v1409 = vmul.f32 %v1365, %v1405
    %1412 = vrot.lane.b32.xlu0 %v1408, 32
    %v1413 = vpop.permute.xlu0 %1412
    %1414 = vrot.lane.b32.xlu0 %v1409, 32
    %v1415 = vpop.permute.xlu0 %1414
    %v1418 = vadd.f32 %v1388, %v1413
    %v1419 = vadd.f32 %v1389, %v1415
    %1422 = vrot.lane.b32.xlu0 %v1418, 64
    %v1423 = vpop.permute.xlu0 %1422
    %1424 = vrot.lane.b32.xlu0 %v1419, 64
    %v1425 = vpop.permute.xlu0 %1424
    %1428 = vst.msk [vmem:[#allocation3] sm:$0xff] %vm249, %v1423
    %1429 = vst.msk [vmem:[#allocation3 + $0x8] sm:$0xff] %vm249, %v1425
    %s1430 = scalar_lea.vmem [#allocation4], 48
    %1431 = vst.msk [vmem:[%s1430] sm:$0xff] %vm249, %v1423
    %s1432 = scalar_lea.vmem [#allocation5], 8
    %1433 = vst.msk [vmem:[%s1432] sm:$0xff] %vm249, %v1425
    %v1434 = vld [vmem:[#allocation3] sm:$0xff]
    %v1435 = vld [vmem:[#allocation3 + $0x8] sm:$0xff]
    %v1437 = vsel %vm249, %v1434, 0
    %v1440 = vsel %vm249, %v1435, 0
    %1442 = vmatprep.subr.mxu0 0.0
    %1443 = vmatpush1.msra.mxu0 0.0
    %1444 = vmatprep.subr.mxu0 0.0
    %1445 = vmatpush1.msra.mxu0 0.0
    %1446 = vmatprep.subr.mxu0 0.0
    %1447 = vmatpush1.msra.mxu0 0.0
    %1448 = vmatprep.subr.mxu0 0.0
    %1449 = vmatpush1.msra.mxu0 0.0
    %1450 = vmatprep.subr.mxu0 0.0
    %1451 = vmatpush1.msra.mxu0 0.0
    %1452 = vmatprep.subr.mxu0 0.0
    %1453 = vmatpush1.msra.mxu0 0.0
    %1454 = vmatprep.subr.mxu0 0.0
    %1455 = vmatpush1.msra.mxu0 0.0
    %1456 = vmatprep.subr.mxu0 0.0
    %1457 = vmatpush1.msra.mxu0 0.0
    %1458 = vmatprep.subr.mxu0 0.0
    %1459 = vmatpush1.msra.mxu0 0.0
    %1460 = vmatprep.subr.mxu0 0.0
    %1461 = vmatpush1.msra.mxu0 0.0
    %1462 = vmatprep.subr.mxu0 0.0
    %1463 = vmatpush1.msra.mxu0 0.0
    %1464 = vmatprep.subr.mxu0 0.0
    %1465 = vmatpush1.msra.mxu0 0.0
    %1466 = vmatprep.subr.mxu0 %v259
    %1467 = vmatpush1.msra.mxu0 %v258
    %1468 = vmatprep.subr.mxu0 %v257
    %1469 = vmatpush1.msra.mxu0 %v256
    %1470 = vmatprep.subr.mxu0 %v255
    %1471 = vmatpush1.msra.mxu0 %v254
    %1472 = vmatprep.subr.mxu0 %v253
    %1473 = vmatpush1.msra.mxu0 %v252
    %1474 = vmatprep.subr.mxu0 0.0
    %1475 = vmatpush2.msra.mxu0 0.0
    %1476 = vmatprep.subr.mxu0 0.0
    %1477 = vmatpush2.msra.mxu0 0.0
    %1478 = vmatprep.subr.mxu0 0.0
    %1479 = vmatpush2.msra.mxu0 0.0
    %1480 = vmatprep.subr.mxu0 0.0
    %1481 = vmatpush2.msra.mxu0 0.0
    %1482 = vmatprep.subr.mxu0 0.0
    %1483 = vmatpush2.msra.mxu0 0.0
    %1484 = vmatprep.subr.mxu0 0.0
    %1485 = vmatpush2.msra.mxu0 0.0
    %1486 = vmatprep.subr.mxu0 0.0
    %1487 = vmatpush2.msra.mxu0 0.0
    %1488 = vmatprep.subr.mxu0 0.0
    %1489 = vmatpush2.msra.mxu0 0.0
    %1490 = vmatprep.subr.mxu0 0.0
    %1491 = vmatpush2.msra.mxu0 0.0
    %1492 = vmatprep.subr.mxu0 0.0
    %1493 = vmatpush2.msra.mxu0 0.0
    %1494 = vmatprep.subr.mxu0 0.0
    %1495 = vmatpush2.msra.mxu0 0.0
    %1496 = vmatprep.subr.mxu0 0.0
    %1497 = vmatpush2.msra.mxu0 0.0
    %1498 = vmatprep.subr.mxu0 0.0
    %1499 = vmatpush2.msra.mxu0 0.0
    %1500 = vmatprep.subr.mxu0 0.0
    %1501 = vmatpush2.msra.mxu0 0.0
    %1502 = vmatprep.subr.mxu0 0.0
    %1503 = vmatpush2.msra.mxu0 0.0
    %1504 = vmatprep.subr.mxu0 0.0
    %1505 = vmatpush2.msra.mxu0 0.0
    %1506 = vmatprep.mubr.f32.mxu0 0.0
    %1507 = vmatmul.mubr.f32.gmra.mxu0 %v1437
    %v1508 = vpop.f32.mrf.mxu0
    %v1509 = vadd.f32 0.0, %v1508
    %v1510 = vpop.f32.mrf.mxu0
    %1511 = vmatprep.mubr.f32.mxu0 0.0
    %1512 = vmatmul.mubr.f32.gmra.mxu0 %v1440
    %v1513 = vpop.f32.mrf.mxu0
    %v1514 = vpop.f32.mrf.mxu0
    %v1515 = vadd.f32 0.0, %v1514
    %1516 = vdwg.mxu0
    %v1517 = vld [vmem:[%s351] sm:$0xff]
    %v1518 = vld [vmem:[%s347 + $0x8] sm:$0xff]
    %v1519 = vadd.f32 %v1517, %v1509
    %v1520 = vadd.f32 %v1518, %v1515
    %v1521 = vmul.f32 %v1519, 0.5
    %v1522 = vmul.f32 %v1520, 0.5
    %v1523 = vtanh.pop %v1521
    %v1524 = vtanh.pop %v1522
    %v1525 = vadd.f32 %v1523, 1.0
    %v1526 = vadd.f32 %v1524, 1.0
    %v1527 = vmul.f32 %v1525, 0.5
    %v1528 = vmul.f32 %v1526, 0.5
    %v1529 = vadd.f32 %v1509, %v366
    %v1530 = vadd.f32 %v1515, %v368
    %1533 = vrot.lane.b32.xlu0 %v1529, 64
    %v1534 = vpop.permute.xlu0 %1533
    %1535 = vrot.lane.b32.xlu0 %v1530, 64
    %v1536 = vpop.permute.xlu0 %1535
    %v1539 = vmul.f32 %v1527, %v1534
    %v1540 = vmul.f32 %v1528, %v1536
    %1543 = vrot.lane.b32.xlu0 %v1539, 64
    %v1544 = vpop.permute.xlu0 %1543
    %1545 = vrot.lane.b32.xlu0 %v1540, 64
    %v1546 = vpop.permute.xlu0 %1545
    %v1549 = vadd.f32 %v1517, %v1544
    %v1550 = vadd.f32 %v1518, %v1546
    %v1551 = vtanh.pop %v1549
    %v1552 = vtanh.pop %v1550
    %1555 = vrot.lane.b32.xlu0 %v1551, 64
    %v1556 = vpop.permute.xlu0 %1555
    %1557 = vrot.lane.b32.xlu0 %v1552, 64
    %v1558 = vpop.permute.xlu0 %1557
    %v1561 = vsub.f32 %v1434, %v1556
    %v1562 = vsub.f32 %v1435, %v1558
    %1565 = vrot.lane.b32.xlu0 %v1561, 32
    %v1566 = vpop.permute.xlu0 %1565
    %1567 = vrot.lane.b32.xlu0 %v1562, 32
    %v1568 = vpop.permute.xlu0 %1567
    %v1571 = vmul.f32 %v1527, %v1566
    %v1572 = vmul.f32 %v1528, %v1568
    %1575 = vrot.lane.b32.xlu0 %v1571, 32
    %v1576 = vpop.permute.xlu0 %1575
    %1577 = vrot.lane.b32.xlu0 %v1572, 32
    %v1578 = vpop.permute.xlu0 %1577
    %v1581 = vadd.f32 %v1551, %v1576
    %v1582 = vadd.f32 %v1552, %v1578
    %1585 = vrot.lane.b32.xlu0 %v1581, 64
    %v1586 = vpop.permute.xlu0 %1585
    %1587 = vrot.lane.b32.xlu0 %v1582, 64
    %v1588 = vpop.permute.xlu0 %1587
    %1591 = vst.msk [vmem:[#allocation3] sm:$0xff] %vm249, %v1586
    %1592 = vst.msk [vmem:[#allocation3 + $0x8] sm:$0xff] %vm249, %v1588
    %s1593 = scalar_lea.vmem [#allocation4], 56
    %1594 = vst.msk [vmem:[%s1593] sm:$0xff] %vm249, %v1586
    %1595 = vst.msk [vmem:[#allocation5] sm:$0xff] %vm249, %v1588
    %v1596 = vld [vmem:[#allocation4] sm:$0xff]
    %v1597 = vld [vmem:[#allocation4 + $0x8] sm:$0xff]
    %v1598 = vld [vmem:[#allocation4 + $0x10] sm:$0xff]
    %v1599 = vld [vmem:[#allocation4 + $0x18] sm:$0xff]
    %v1600 = vld [vmem:[#allocation4 + $0x20] sm:$0xff]
    %v1601 = vld [vmem:[#allocation4 + $0x28] sm:$0xff]
    %v1602 = vld [vmem:[#allocation4 + $0x30] sm:$0xff]
    %v1603 = vld [vmem:[#allocation4 + $0x38] sm:$0xff]
    %v1604 = vld [vmem:[#allocation9] sm:$0xff]
    %v1605 = vld [vmem:[#allocation9 + $0x8] sm:$0xff]
    %v1606 = vld [vmem:[#allocation9 + $0x10] sm:$0xff]
    %v1607 = vld [vmem:[#allocation9 + $0x18] sm:$0xff]
    %v1608 = vld [vmem:[#allocation5] sm:$0xff]
    %v1609 = vld [vmem:[#allocation5 + $0x8] sm:$0xff]
    %v1610 = vld [vmem:[#allocation5 + $0x10] sm:$0xff]
    %v1611 = vld [vmem:[#allocation5 + $0x18] sm:$0xff]
    %v1612 = vld [vmem:[#allocation5 + $0x20] sm:$0xff]
    %v1613 = vld [vmem:[#allocation5 + $0x28] sm:$0xff]
    %v1614 = vld [vmem:[#allocation5 + $0x30] sm:$0xff]
    %v1615 = vld [vmem:[#allocation5 + $0x38] sm:$0xff]
    %v1616 = vld [vmem:[#allocation11] sm:$0xff]
    %v1617 = vld [vmem:[#allocation11 + $0x8] sm:$0xff]
    %v1618 = vld [vmem:[#allocation11 + $0x10] sm:$0xff]
    %v1619 = vld [vmem:[#allocation11 + $0x18] sm:$0xff]
    %v1621 = vsel %vm249, %v1608, 0
    %v1624 = vsel %vm249, %v1609, 0
    %v1627 = vsel %vm249, %v1610, 0
    %v1630 = vsel %vm249, %v1611, 0
    %v1633 = vsel %vm249, %v1612, 0
    %v1636 = vsel %vm249, %v1613, 0
    %v1639 = vsel %vm249, %v1614, 0
    %v1642 = vsel %vm249, %v1615, 0
    %1644 = vmatprep.subr.mxu0 0.0
    %1645 = vmatpush1.msra.mxu0 0.0
    %1646 = vmatprep.subr.mxu0 0.0
    %1647 = vmatpush1.msra.mxu0 0.0
    %1648 = vmatprep.subr.mxu0 0.0
    %1649 = vmatpush1.msra.mxu0 0.0
    %1650 = vmatprep.subr.mxu0 0.0
    %1651 = vmatpush1.msra.mxu0 0.0
    %1652 = vmatprep.subr.mxu0 0.0
    %1653 = vmatpush1.msra.mxu0 0.0
    %1654 = vmatprep.subr.mxu0 0.0
    %1655 = vmatpush1.msra.mxu0 0.0
    %1656 = vmatprep.subr.mxu0 0.0
    %1657 = vmatpush1.msra.mxu0 0.0
    %1658 = vmatprep.subr.mxu0 0.0
    %1659 = vmatpush1.msra.mxu0 0.0
    %1660 = vmatprep.subr.mxu0 0.0
    %1661 = vmatpush1.msra.mxu0 0.0
    %1662 = vmatprep.subr.mxu0 0.0
    %1663 = vmatpush1.msra.mxu0 0.0
    %1664 = vmatprep.subr.mxu0 0.0
    %1665 = vmatpush1.msra.mxu0 0.0
    %1666 = vmatprep.subr.mxu0 0.0
    %1667 = vmatpush1.msra.mxu0 0.0
    %1668 = vmatprep.subr.mxu0 0.0
    %1669 = vmatpush1.msra.mxu0 %v1619
    %1670 = vmatprep.subr.mxu0 0.0
    %1671 = vmatpush1.msra.mxu0 %v1618
    %1672 = vmatprep.subr.mxu0 0.0
    %1673 = vmatpush1.msra.mxu0 %v1617
    %1674 = vmatprep.subr.mxu0 0.0
    %1675 = vmatpush1.msra.mxu0 %v1616
    %1676 = vmatprep.subr.mxu0 0.0
    %1677 = vmatpush2.msra.mxu0 0.0
    %1678 = vmatprep.subr.mxu0 0.0
    %1679 = vmatpush2.msra.mxu0 0.0
    %1680 = vmatprep.subr.mxu0 0.0
    %1681 = vmatpush2.msra.mxu0 0.0
    %1682 = vmatprep.subr.mxu0 0.0
    %1683 = vmatpush2.msra.mxu0 0.0
    %1684 = vmatprep.subr.mxu0 0.0
    %1685 = vmatpush2.msra.mxu0 0.0
    %1686 = vmatprep.subr.mxu0 0.0
    %1687 = vmatpush2.msra.mxu0 0.0
    %1688 = vmatprep.subr.mxu0 0.0
    %1689 = vmatpush2.msra.mxu0 0.0
    %1690 = vmatprep.subr.mxu0 0.0
    %1691 = vmatpush2.msra.mxu0 0.0
    %1692 = vmatprep.subr.mxu0 0.0
    %1693 = vmatpush2.msra.mxu0 0.0
    %1694 = vmatprep.subr.mxu0 0.0
    %1695 = vmatpush2.msra.mxu0 0.0
    %1696 = vmatprep.subr.mxu0 0.0
    %1697 = vmatpush2.msra.mxu0 0.0
    %1698 = vmatprep.subr.mxu0 0.0
    %1699 = vmatpush2.msra.mxu0 0.0
    %1700 = vmatprep.subr.mxu0 0.0
    %1701 = vmatpush2.msra.mxu0 0.0
    %1702 = vmatprep.subr.mxu0 0.0
    %1703 = vmatpush2.msra.mxu0 0.0
    %1704 = vmatprep.subr.mxu0 0.0
    %1705 = vmatpush2.msra.mxu0 0.0
    %1706 = vmatprep.subr.mxu0 0.0
    %1707 = vmatpush2.msra.mxu0 0.0
    %1708 = vmatprep.mubr.f32.mxu0 0.0
    %1709 = vmatmul.mubr.f32.gmra.mxu0 %v1621
    %v1710 = vpop.f32.mrf.mxu0
    %v1711 = vadd.f32 0.0, %v1710
    %v1712 = vpop.f32.mrf.mxu0
    %1713 = vmatprep.mubr.f32.mxu0 0.0
    %1714 = vmatmul.mubr.f32.gmra.mxu0 %v1624
    %v1715 = vpop.f32.mrf.mxu0
    %v1716 = vadd.f32 0.0, %v1715
    %v1717 = vpop.f32.mrf.mxu0
    %1718 = vmatprep.mubr.f32.mxu0 0.0
    %1719 = vmatmul.mubr.f32.gmra.mxu0 %v1627
    %v1720 = vpop.f32.mrf.mxu0
    %v1721 = vadd.f32 0.0, %v1720
    %v1722 = vpop.f32.mrf.mxu0
    %1723 = vmatprep.mubr.f32.mxu0 0.0
    %1724 = vmatmul.mubr.f32.gmra.mxu0 %v1630
    %v1725 = vpop.f32.mrf.mxu0
    %v1726 = vadd.f32 0.0, %v1725
    %v1727 = vpop.f32.mrf.mxu0
    %1728 = vmatprep.mubr.f32.mxu0 0.0
    %1729 = vmatmul.mubr.f32.gmra.mxu0 %v1633
    %v1730 = vpop.f32.mrf.mxu0
    %v1731 = vadd.f32 0.0, %v1730
    %v1732 = vpop.f32.mrf.mxu0
    %1733 = vmatprep.mubr.f32.mxu0 0.0
    %1734 = vmatmul.mubr.f32.gmra.mxu0 %v1636
    %v1735 = vpop.f32.mrf.mxu0
    %v1736 = vadd.f32 0.0, %v1735
    %v1737 = vpop.f32.mrf.mxu0
    %1738 = vmatprep.mubr.f32.mxu0 0.0
    %1739 = vmatmul.mubr.f32.gmra.mxu0 %v1639
    %v1740 = vpop.f32.mrf.mxu0
    %v1741 = vadd.f32 0.0, %v1740
    %v1742 = vpop.f32.mrf.mxu0
    %1743 = vmatprep.mubr.f32.mxu0 0.0
    %1744 = vmatmul.mubr.f32.gmra.mxu0 %v1642
    %v1745 = vpop.f32.mrf.mxu0
    %v1746 = vadd.f32 0.0, %v1745
    %v1747 = vpop.f32.mrf.mxu0
    %1748 = vdwg.mxu0
    %v1750 = vsel %vm249, %v1596, 0
    %v1753 = vsel %vm249, %v1597, 0
    %v1756 = vsel %vm249, %v1598, 0
    %v1759 = vsel %vm249, %v1599, 0
    %v1762 = vsel %vm249, %v1600, 0
    %v1765 = vsel %vm249, %v1601, 0
    %v1768 = vsel %vm249, %v1602, 0
    %v1771 = vsel %vm249, %v1603, 0
    %1773 = vmatprep.subr.mxu0 0.0
    %1774 = vmatpush1.msra.mxu0 0.0
    %1775 = vmatprep.subr.mxu0 0.0
    %1776 = vmatpush1.msra.mxu0 0.0
    %1777 = vmatprep.subr.mxu0 0.0
    %1778 = vmatpush1.msra.mxu0 0.0
    %1779 = vmatprep.subr.mxu0 0.0
    %1780 = vmatpush1.msra.mxu0 0.0
    %1781 = vmatprep.subr.mxu0 0.0
    %1782 = vmatpush1.msra.mxu0 0.0
    %1783 = vmatprep.subr.mxu0 0.0
    %1784 = vmatpush1.msra.mxu0 0.0
    %1785 = vmatprep.subr.mxu0 0.0
    %1786 = vmatpush1.msra.mxu0 0.0
    %1787 = vmatprep.subr.mxu0 0.0
    %1788 = vmatpush1.msra.mxu0 0.0
    %1789 = vmatprep.subr.mxu0 0.0
    %1790 = vmatpush1.msra.mxu0 0.0
    %1791 = vmatprep.subr.mxu0 0.0
    %1792 = vmatpush1.msra.mxu0 0.0
    %1793 = vmatprep.subr.mxu0 0.0
    %1794 = vmatpush1.msra.mxu0 0.0
    %1795 = vmatprep.subr.mxu0 0.0
    %1796 = vmatpush1.msra.mxu0 0.0
    %1797 = vmatprep.subr.mxu0 0.0
    %1798 = vmatpush1.msra.mxu0 %v1607
    %1799 = vmatprep.subr.mxu0 0.0
    %1800 = vmatpush1.msra.mxu0 %v1606
    %1801 = vmatprep.subr.mxu0 0.0
    %1802 = vmatpush1.msra.mxu0 %v1605
    %1803 = vmatprep.subr.mxu0 0.0
    %1804 = vmatpush1.msra.mxu0 %v1604
    %1805 = vmatprep.subr.mxu0 0.0
    %1806 = vmatpush2.msra.mxu0 0.0
    %1807 = vmatprep.subr.mxu0 0.0
    %1808 = vmatpush2.msra.mxu0 0.0
    %1809 = vmatprep.subr.mxu0 0.0
    %1810 = vmatpush2.msra.mxu0 0.0
    %1811 = vmatprep.subr.mxu0 0.0
    %1812 = vmatpush2.msra.mxu0 0.0
    %1813 = vmatprep.subr.mxu0 0.0
    %1814 = vmatpush2.msra.mxu0 0.0
    %1815 = vmatprep.subr.mxu0 0.0
    %1816 = vmatpush2.msra.mxu0 0.0
    %1817 = vmatprep.subr.mxu0 0.0
    %1818 = vmatpush2.msra.mxu0 0.0
    %1819 = vmatprep.subr.mxu0 0.0
    %1820 = vmatpush2.msra.mxu0 0.0
    %1821 = vmatprep.subr.mxu0 0.0
    %1822 = vmatpush2.msra.mxu0 0.0
    %1823 = vmatprep.subr.mxu0 0.0
    %1824 = vmatpush2.msra.mxu0 0.0
    %1825 = vmatprep.subr.mxu0 0.0
    %1826 = vmatpush2.msra.mxu0 0.0
    %1827 = vmatprep.subr.mxu0 0.0
    %1828 = vmatpush2.msra.mxu0 0.0
    %1829 = vmatprep.subr.mxu0 0.0
    %1830 = vmatpush2.msra.mxu0 0.0
    %1831 = vmatprep.subr.mxu0 0.0
    %1832 = vmatpush2.msra.mxu0 0.0
    %1833 = vmatprep.subr.mxu0 0.0
    %1834 = vmatpush2.msra.mxu0 0.0
    %1835 = vmatprep.subr.mxu0 0.0
    %1836 = vmatpush2.msra.mxu0 0.0
    %1837 = vmatprep.mubr.f32.mxu0 0.0
    %1838 = vmatmul.mubr.f32.gmra.mxu0 %v1750
    %v1839 = vpop.f32.mrf.mxu0
    %v1840 = vadd.f32 %v1711, %v1839
    %v1841 = vpop.f32.mrf.mxu0
    %1842 = vmatprep.mubr.f32.mxu0 0.0
    %1843 = vmatmul.mubr.f32.gmra.mxu0 %v1753
    %v1844 = vpop.f32.mrf.mxu0
    %v1845 = vadd.f32 %v1716, %v1844
    %v1846 = vpop.f32.mrf.mxu0
    %1847 = vmatprep.mubr.f32.mxu0 0.0
    %1848 = vmatmul.mubr.f32.gmra.mxu0 %v1756
    %v1849 = vpop.f32.mrf.mxu0
    %v1850 = vadd.f32 %v1721, %v1849
    %v1851 = vpop.f32.mrf.mxu0
    %1852 = vmatprep.mubr.f32.mxu0 0.0
    %1853 = vmatmul.mubr.f32.gmra.mxu0 %v1759
    %v1854 = vpop.f32.mrf.mxu0
    %v1855 = vadd.f32 %v1726, %v1854
    %v1856 = vpop.f32.mrf.mxu0
    %1857 = vmatprep.mubr.f32.mxu0 0.0
    %1858 = vmatmul.mubr.f32.gmra.mxu0 %v1762
    %v1859 = vpop.f32.mrf.mxu0
    %v1860 = vadd.f32 %v1731, %v1859
    %v1861 = vpop.f32.mrf.mxu0
    %1862 = vmatprep.mubr.f32.mxu0 0.0
    %1863 = vmatmul.mubr.f32.gmra.mxu0 %v1765
    %v1864 = vpop.f32.mrf.mxu0
    %v1865 = vadd.f32 %v1736, %v1864
    %v1866 = vpop.f32.mrf.mxu0
    %1867 = vmatprep.mubr.f32.mxu0 0.0
    %1868 = vmatmul.mubr.f32.gmra.mxu0 %v1768
    %v1869 = vpop.f32.mrf.mxu0
    %v1870 = vadd.f32 %v1741, %v1869
    %v1871 = vpop.f32.mrf.mxu0
    %1872 = vmatprep.mubr.f32.mxu0 0.0
    %1873 = vmatmul.mubr.f32.gmra.mxu0 %v1771
    %v1874 = vpop.f32.mrf.mxu0
    %v1875 = vadd.f32 %v1746, %v1874
    %v1876 = vpop.f32.mrf.mxu0
    %1877 = vdwg.mxu0
    %v1878 = vld [vmem:[%s7] sm:$0x1]
    %v1880 = vlaneseq
    %v1881 = vshrl.u32 %v1880, 7
    %v1882 = vsub.s32 0, %v1881
    %v1883 = vrot.slane %v1878, %v1882
    %v1885 = vadd.f32 %v1840, %v1883
    %v1886 = vadd.f32 %v1845, %v1883
    %v1887 = vadd.f32 %v1850, %v1883
    %v1888 = vadd.f32 %v1855, %v1883
    %v1889 = vadd.f32 %v1860, %v1883
    %v1890 = vadd.f32 %v1865, %v1883
    %v1891 = vadd.f32 %v1870, %v1883
    %v1892 = vadd.f32 %v1875, %v1883
    %1893 = vst [vmem:[#allocation12] sm:$0xff] %v1885
    %1894 = vst [vmem:[#allocation12 + $0x8] sm:$0xff] %v1886
    %1895 = vst [vmem:[#allocation12 + $0x10] sm:$0xff] %v1887
    %1896 = vst [vmem:[#allocation12 + $0x18] sm:$0xff] %v1888
    %1897 = vst [vmem:[#allocation12 + $0x20] sm:$0xff] %v1889
    %1898 = vst [vmem:[#allocation12 + $0x28] sm:$0xff] %v1890
    %1899 = vst [vmem:[#allocation12 + $0x30] sm:$0xff] %v1891
    %1900 = vst [vmem:[#allocation12 + $0x38] sm:$0xff] %v1892
    // Predicated region
    $region46: #{tpu_custom_call.1} parent=1 // pred_check
      _
    $region47: #{tpu_custom_call.1} parent=1 // pred_check_branch
      %1902 = sbr.rel (0) target = $region49
    $region48: #{tpu_custom_call.1} parent=1 // pred_region
      %s1904 = ssub.s32 1024, 1024
      %1905 = vsyncadd [#allocation8], %s1904
      %s1906 = sshll.u32 [#allocation12], 4
      %s1907 = int_to_ptr.vmem [resolvable:$true] %s1906
      %1912 = dma.vmem_to_hbm [thread:$0]  %s1907, 1024, %s8, [#allocation8], 128, 128, 8
    $region49: #{tpu_custom_call.1} parent=1 // pred_fallthru
      _
    // Predicated region
    $region50: #{tpu_custom_call.1} parent=1 // pred_check
      _
    $region51: #{tpu_custom_call.1} parent=1 // pred_check_branch
      %1914 = sbr.rel (0) target = $region53
    $region52: #{tpu_custom_call.1} parent=1 // pred_region
      %1915 = dma.done [#allocation8], 1024
    $region53: #{tpu_custom_call.1} parent=1 // pred_fallthru
      _
    %1916 = vsyncpa [#allocation7], 1
    %1917 = vsyncpa [#allocation10], 1
    %1918 = vsyncpa [#allocation8], 1

</llo_original>
